<compile_context>
chip_gen: v7x
topology: tpu7x:2x2x1
jax: 0.10.0
libtpu: 0.0.40
codegen_flags: <defaults>
</compile_context>

<pallas_src>
import math
from functools import partial

import jax
import jax.numpy as jnp
from jax import lax
from jax.experimental import pallas as pl
from jax.experimental.pallas import tpu as pltpu


_VMEM_LIMIT_BYTES = 48 * 1024 * 1024   # <= v7x's 64 MiB physical VMEM, with headroom.


def _pick_row_tile(n, max_tile):
    """Largest row tile (multiple of 8) <= max_tile dividing n; n itself if already small."""
    if n <= max_tile:
        return n
    start = max_tile - (max_tile % 8)
    for t in range(start, 7, -8):
        if n % t == 0:
            return t
    return n


# ----------------------------------------------------------------------------
# Fused (PE add) + multi-head-attention + (residual) + LayerNorm kernel
# ----------------------------------------------------------------------------
def _mha_ln_kernel(*refs, num_heads, eps, add_residual, has_k, has_qpe, has_kpe, v_from):
    f32 = jnp.float32
    bf16 = jnp.bfloat16

    refs = list(refs)
    o_ref = refs.pop()                      # output ref is last
    idx = 0
    qb_ref = refs[idx]; idx += 1            # (1, tq, E)  query-side base (pre-PE)
    if has_k:
        kb_ref = refs[idx]; idx += 1        # (1, Nk, E)  key-side base (pre-PE)
    else:
        kb_ref = qb_ref
    qpe_ref = None
    if has_qpe:
        qpe_ref = refs[idx]; idx += 1
    kpe_ref = None
    if has_kpe:
        kpe_ref = refs[idx]; idx += 1
    (wq_ref, bq_ref, wk_ref, bk_ref, wv_ref, bv_ref,
     wo_ref, bo_ref, g_ref, beta_ref) = refs[idx:]

    # --- fused positional-embedding adds (all resident in VMEM) ---
    q_in = qb_ref[0]
    if has_qpe:
        q_in = q_in + qpe_ref[0]
    if has_k:
        k_in = kb_ref[0]
        if has_kpe:
            k_in = k_in + kpe_ref[0]
    else:
        k_in = q_in                          # self-attention: k == q
    v_in = qb_ref[0] if v_from == "q" else kb_ref[0]   # v is always a pre-PE tensor

    # --- Q/K/V projections: bf16 MXU inputs (weights pre-cast), f32 accumulation ---
    qf = jnp.dot(q_in.astype(bf16), wq_ref[...], preferred_element_type=f32) + bq_ref[...]
    kf = jnp.dot(k_in.astype(bf16), wk_ref[...], preferred_element_type=f32) + bk_ref[...]
    vf = jnp.dot(v_in.astype(bf16), wv_ref[...], preferred_element_type=f32) + bv_ref[...]

    nq = q_in.shape[0]
    nk = k_in.shape[0]
    internal = wq_ref.shape[1]
    dh = internal // num_heads
    scale = 1.0 / math.sqrt(dh)

    # --- batched-over-heads attention (no per-head loop, no lane concat) ---
    qh = jnp.transpose(qf.astype(bf16).reshape(nq, num_heads, dh), (1, 0, 2))  # (H, Nq, dh)
    kh = jnp.transpose(kf.astype(bf16).reshape(nk, num_heads, dh), (1, 0, 2))  # (H, Nk, dh)
    vh = jnp.transpose(vf.astype(bf16).reshape(nk, num_heads, dh), (1, 0, 2))  # (H, Nk, dh)

    s = jnp.einsum('hqd,hkd->hqk', qh, kh, preferred_element_type=f32) * scale  # (H, Nq, Nk)
    s = s - jnp.max(s, axis=-1, keepdims=True)
    p = jnp.exp(s)
    p = p / jnp.sum(p, axis=-1, keepdims=True)     # exact divide (tiny vs the matmuls)
    ctx = jnp.einsum('hqk,hkd->hqd', p.astype(bf16), vh,
                     preferred_element_type=f32)                                 # (H, Nq, dh)
    merged = jnp.transpose(ctx, (1, 0, 2)).reshape(nq, internal)                 # (Nq, I)

    attn_out = jnp.dot(merged.astype(bf16), wo_ref[...],
                       preferred_element_type=f32) + bo_ref[...]                 # (Nq, E)

    x = qb_ref[0] + attn_out if add_residual else attn_out

    # --- LayerNorm (biased variance, matches nn.LayerNorm), f32 statistics ---
    mean = jnp.mean(x, axis=-1, keepdims=True)
    xc = x - mean
    var = jnp.mean(xc * xc, axis=-1, keepdims=True)
    inv = lax.rsqrt(var + eps)
    o_ref[0] = xc * inv * g_ref[...] + beta_ref[...]


def mha_ln(p, qbase, kbase, qpe, kpe, gamma, beta, *,
           num_heads, add_residual, v_from, eps=1e-5, row_block=512):
    """Fused MHA(+PE adds)(+residual)+LayerNorm.

    qbase: (B, Nq, E) query-side base tensor (pre-PE); also the residual source.
    kbase: (B, Nk, E) key-side base tensor, or None to reuse qbase (self-attention).
    qpe/kpe: optional positional embeddings, added inside the kernel.
    v_from: "q" or "k" -- which (pre-PE) base tensor feeds the value projection.
    """
    B, Nq, E = qbase.shape
    has_k = kbase is not None
    Nk = kbase.shape[1] if has_k else Nq
    has_qpe = qpe is not None
    has_kpe = kpe is not None
    internal = p["wq"].shape[1]
    assert internal % num_heads == 0, "num_heads must divide internal dim"

    # Row-tile the query axis (independent softmax rows); k/v stay whole per program.
    tq = Nq if not has_k else _pick_row_tile(Nq, row_block)
    n_row = Nq // tq

    row_tiled = lambda b, r: (b, r, 0)
    full_rows = lambda b, r: (b, 0, 0)
    shared = lambda b, r: (0, 0)

    bf16 = jnp.bfloat16
    inputs, in_specs = [], []
    inputs.append(qbase); in_specs.append(pl.BlockSpec((1, tq, E), row_tiled))
    if has_k:
        inputs.append(kbase); in_specs.append(pl.BlockSpec((1, Nk, E), full_rows))
    if has_qpe:
        inputs.append(qpe); in_specs.append(pl.BlockSpec((1, tq, E), row_tiled))
    if has_kpe:
        inputs.append(kpe); in_specs.append(pl.BlockSpec((1, Nk, E), full_rows))

    # Weights pre-cast to bf16 (halves weight DMA + VMEM); biases / LN params stay f32.
    weight_args = [
        (p["wq"].astype(bf16),          pl.BlockSpec((E, internal), shared)),
        (p["bq"].reshape(1, internal),  pl.BlockSpec((1, internal), shared)),
        (p["wk"].astype(bf16),          pl.BlockSpec((E, internal), shared)),
        (p["bk"].reshape(1, internal),  pl.BlockSpec((1, internal), shared)),
        (p["wv"].astype(bf16),          pl.BlockSpec((E, internal), shared)),
        (p["bv"].reshape(1, internal),  pl.BlockSpec((1, internal), shared)),
        (p["wo"].astype(bf16),          pl.BlockSpec((internal, E), shared)),
        (p["bo"].reshape(1, E),         pl.BlockSpec((1, E), shared)),
        (gamma.reshape(1, E),           pl.BlockSpec((1, E), shared)),
        (beta.reshape(1, E),            pl.BlockSpec((1, E), shared)),
    ]
    for arr, spec in weight_args:
        inputs.append(arr); in_specs.append(spec)

    kernel = partial(_mha_ln_kernel, num_heads=num_heads, eps=eps,
                     add_residual=add_residual, has_k=has_k,
                     has_qpe=has_qpe, has_kpe=has_kpe, v_from=v_from)

    return pl.pallas_call(
        kernel,
        out_shape=jax.ShapeDtypeStruct((B, Nq, E), jnp.float32),
        grid=(B, n_row),
        in_specs=in_specs,
        out_specs=pl.BlockSpec((1, tq, E), row_tiled),
        compiler_params=pltpu.CompilerParams(
            dimension_semantics=("parallel", "parallel"),
            vmem_limit_bytes=_VMEM_LIMIT_BYTES),
    )(*inputs)


# ----------------------------------------------------------------------------
# Fused MLP (lin1 + ReLU + lin2) + residual + LayerNorm kernel
# ----------------------------------------------------------------------------
def _mlp_ln_kernel(x_ref, w1_ref, b1_ref, w2_ref, b2_ref, g_ref, beta_ref, o_ref, *, eps):
    f32 = jnp.float32
    bf16 = jnp.bfloat16
    x = x_ref[...]                                                   # (tr, E) f32
    h = jnp.dot(x.astype(bf16), w1_ref[...], preferred_element_type=f32) + b1_ref[...]
    h = jnp.maximum(h, 0.0)                                          # ReLU (f32, VPU)
    y = jnp.dot(h.astype(bf16), w2_ref[...], preferred_element_type=f32) + b2_ref[...]
    z = x + y                                                        # residual
    mean = jnp.mean(z, axis=-1, keepdims=True)
    zc = z - mean
    var = jnp.mean(zc * zc, axis=-1, keepdims=True)
    o_ref[...] = zc * lax.rsqrt(var + eps) * g_ref[...] + beta_ref[...]


def mlp_ln(x, w1, b1, w2, b2, gamma, beta, eps=1e-5, row_block=256):
    """Fused MLP + residual + LayerNorm; batch folded into the matmul M dimension."""
    B, N, E = x.shape
    Dm = w1.shape[1]
    M = B * N
    xf = x.reshape(M, E)
    tr = _pick_row_tile(M, row_block)
    n_row = M // tr

    bf16 = jnp.bfloat16
    row_tiled = lambda r: (r, 0)
    shared = lambda r: (0, 0)

    out = pl.pallas_call(
        partial(_mlp_ln_kernel, eps=eps),
        out_shape=jax.ShapeDtypeStruct((M, E), jnp.float32),
        grid=(n_row,),
        in_specs=[
            pl.BlockSpec((tr, E), row_tiled),
            pl.BlockSpec((E, Dm), shared),
            pl.BlockSpec((1, Dm), shared),
            pl.BlockSpec((Dm, E), shared),
            pl.BlockSpec((1, E), shared),
            pl.BlockSpec((1, E), shared),
            pl.BlockSpec((1, E), shared),
        ],
        out_specs=pl.BlockSpec((tr, E), row_tiled),
        compiler_params=pltpu.CompilerParams(
            dimension_semantics=("parallel",),
            vmem_limit_bytes=_VMEM_LIMIT_BYTES),
    )(xf, w1.astype(bf16), b1.reshape(1, Dm), w2.astype(bf16), b2.reshape(1, E),
      gamma.reshape(1, E), beta.reshape(1, E))
    return out.reshape(B, N, E)


# ----------------------------------------------------------------------------
# TwoWayAttnBlock forward (thin glue around the fused kernels)
# ----------------------------------------------------------------------------
def two_way_attn_block(p, queries, keys, query_pos_embed, key_pos_embed,
                       num_heads, skip_first_layer_pe):
    # ---- self attention (+ residual) + norm1 : one fused kernel ----
    if skip_first_layer_pe:
        queries = mha_ln(p["self_attn"], queries, None, None, None,
                         p["norm1_g"], p["norm1_b"],
                         num_heads=num_heads, add_residual=False, v_from="q")
    else:
        queries = mha_ln(p["self_attn"], queries, None, query_pos_embed, None,
                         p["norm1_g"], p["norm1_b"],
                         num_heads=num_heads, add_residual=True, v_from="q")

    # ---- cross attention token -> image + residual + norm2 ----
    queries = mha_ln(p["cross_t2i"], queries, keys, query_pos_embed, key_pos_embed,
                     p["norm2_g"], p["norm2_b"],
                     num_heads=num_heads, add_residual=True, v_from="k")

    # ---- MLP + residual + norm3 ----
    queries = mlp_ln(queries, p["lin1_w"], p["lin1_b"], p["lin2_w"], p["lin2_b"],
                     p["norm3_g"], p["norm3_b"])

    # ---- cross attention image -> token + residual + norm4 (updates keys) ----
    # q-side = keys (+kpe), k-side = queries (+qpe), v = queries, residual = keys.
    keys = mha_ln(p["cross_i2t"], keys, queries, key_pos_embed, query_pos_embed,
                  p["norm4_g"], p["norm4_b"],
                  num_heads=num_heads, add_residual=True, v_from="k")

    return queries, keys


# ----------------------------------------------------------------------------
# Pure-JAX reference (f32), used only for a correctness check in __main__
# ----------------------------------------------------------------------------
def _mha_ref(p, q, k, v, num_heads):
    qf = q @ p["wq"] + p["bq"]
    kf = k @ p["wk"] + p["bk"]
    vf = v @ p["wv"] + p["bv"]
    B, Nq, I = qf.shape
    dh = I // num_heads
    qh = qf.reshape(B, Nq, num_heads, dh).transpose(0, 2, 1, 3)
    kh = kf.reshape(B, -1, num_heads, dh).transpose(0, 2, 1, 3)
    vh = vf.reshape(B, -1, num_heads, dh).transpose(0, 2, 1, 3)
    s = jnp.einsum('bhqd,bhkd->bhqk', qh, kh) / math.sqrt(dh)
    a = jax.nn.softmax(s, axis=-1)
    out = jnp.einsum('bhqk,bhkd->bhqd', a, vh)
    out = out.transpose(0, 2, 1, 3).reshape(B, Nq, I)
    return out @ p["wo"] + p["bo"]


def _ln_ref(x, g, b, eps=1e-5):
    m = x.mean(-1, keepdims=True)
    v = ((x - m) ** 2).mean(-1, keepdims=True)
    return (x - m) / jnp.sqrt(v + eps) * g + b


def _block_ref(p, queries, keys, qpe, kpe, num_heads, skip_first_layer_pe):
    if skip_first_layer_pe:
        queries = _mha_ref(p["self_attn"], queries, queries, queries, num_heads)
    else:
        q = queries + qpe
        queries = queries + _mha_ref(p["self_attn"], q, q, queries, num_heads)
    queries = _ln_ref(queries, p["norm1_g"], p["norm1_b"])
    q = queries + qpe
    k = keys + kpe
    queries = queries + _mha_ref(p["cross_t2i"], q, k, keys, num_heads)
    queries = _ln_ref(queries, p["norm2_g"], p["norm2_b"])
    h = jnp.maximum(queries @ p["lin1_w"] + p["lin1_b"], 0.0)
    queries = queries + (h @ p["lin2_w"] + p["lin2_b"])
    queries = _ln_ref(queries, p["norm3_g"], p["norm3_b"])
    q = queries + qpe
    k = keys + kpe
    keys = keys + _mha_ref(p["cross_i2t"], k, q, queries, num_heads)
    keys = _ln_ref(keys, p["norm4_g"], p["norm4_b"])
    return queries, keys


# ----------------------------------------------------------------------------
# Deterministic parameter initialization (synthetic, not a checkpoint)
# ----------------------------------------------------------------------------
def _init_linear(key, din, dout):
    kw, kb = jax.random.split(key)
    w = jax.random.normal(kw, (din, dout), jnp.float32) * (1.0 / math.sqrt(din))
    b = jax.random.normal(kb, (dout,), jnp.float32) * 0.01
    return w, b


def _init_mha(key, embed_dim, downsample_rate):
    internal = embed_dim // downsample_rate
    ks = jax.random.split(key, 4)
    wq, bq = _init_linear(ks[0], embed_dim, internal)
    wk, bk = _init_linear(ks[1], embed_dim, internal)
    wv, bv = _init_linear(ks[2], embed_dim, internal)
    wo, bo = _init_linear(ks[3], internal, embed_dim)
    return dict(wq=wq, bq=bq, wk=wk, bk=bk, wv=wv, bv=bv, wo=wo, bo=bo)


def init_two_way_attn_block(key, embed_dim, mlp_dim, attention_downsample_rate=2):
    ks = jax.random.split(key, 5)
    p = {}
    p["self_attn"] = _init_mha(ks[0], embed_dim, 1)
    p["cross_t2i"] = _init_mha(ks[1], embed_dim, attention_downsample_rate)
    p["cross_i2t"] = _init_mha(ks[2], embed_dim, attention_downsample_rate)
    p["lin1_w"], p["lin1_b"] = _init_linear(ks[3], embed_dim, mlp_dim)
    p["lin2_w"], p["lin2_b"] = _init_linear(ks[4], mlp_dim, embed_dim)
    for n in ("norm1", "norm2", "norm3", "norm4"):
        p[n + "_g"] = jnp.ones((embed_dim,), jnp.float32)
        p[n + "_b"] = jnp.zeros((embed_dim,), jnp.float32)
    return p


# ----------------------------------------------------------------------------
if __name__ == "__main__":
    embed_dim = 32
    num_heads = 4
    mlp_dim = 64
    attention_downsample_rate = 2

    B = 2
    n_points = 8          # query tokens
    H, W = 8, 8           # image grid -> 64 key tokens
    n_keys = H * W

    root = jax.random.PRNGKey(0)
    kp1, kp2, kq, kk, kqpe, kkpe = jax.random.split(root, 6)

    params0 = init_two_way_attn_block(kp1, embed_dim, mlp_dim, attention_downsample_rate)
    params1 = init_two_way_attn_block(kp2, embed_dim, mlp_dim, attention_downsample_rate)

    queries = jax.random.normal(kq, (B, n_points, embed_dim), jnp.float32)
    keys = jax.random.normal(kk, (B, n_keys, embed_dim), jnp.float32)
    query_pos_embed = jax.random.normal(kqpe, (B, n_points, embed_dim), jnp.float32)
    key_pos_embed = jax.random.normal(kkpe, (B, n_keys, embed_dim), jnp.float32)

    # Exercise both block variants (layer-0 style skip_first_layer_pe=True, then False).
    q1, k1 = two_way_attn_block(params0, queries, keys, query_pos_embed, key_pos_embed,
                                num_heads, skip_first_layer_pe=True)
    q2, k2 = two_way_attn_block(params1, q1, k1, query_pos_embed, key_pos_embed,
                                num_heads, skip_first_layer_pe=False)

    q2 = jax.block_until_ready(q2)
    k2 = jax.block_until_ready(k2)

    assert q2.shape == (B, n_points, embed_dim)
    assert k2.shape == (B, n_keys, embed_dim)
    assert jnp.all(jnp.isfinite(q2)) and jnp.all(jnp.isfinite(k2))

    # Pure-JAX f32 reference; generous tolerance covers the deliberate bf16 MXU casts.
    rq1, rk1 = _block_ref(params0, queries, keys, query_pos_embed, key_pos_embed,
                          num_heads, skip_first_layer_pe=True)
    rq2, rk2 = _block_ref(params1, rq1, rk1, query_pos_embed, key_pos_embed,
                          num_heads, skip_first_layer_pe=False)
    assert jnp.max(jnp.abs(q2 - rq2)) < 0.1, float(jnp.max(jnp.abs(q2 - rq2)))
    assert jnp.max(jnp.abs(k2 - rk2)) < 0.1, float(jnp.max(jnp.abs(k2 - rk2)))

    print("KERNEL_OK")
</pallas_src>

<mosaic_0001>
module attributes {stable_mosaic.version = 11 : i64} {
  func.func @_mha_ln_kernel(%arg0: i32, %arg1: i32, %arg2: memref<1x8x32xf32, #tpu.memory_space<vmem>>, %arg3: memref<32x32xbf16, #tpu.memory_space<vmem>>, %arg4: memref<1x32xf32, #tpu.memory_space<vmem>>, %arg5: memref<32x32xbf16, #tpu.memory_space<vmem>>, %arg6: memref<1x32xf32, #tpu.memory_space<vmem>>, %arg7: memref<32x32xbf16, #tpu.memory_space<vmem>>, %arg8: memref<1x32xf32, #tpu.memory_space<vmem>>, %arg9: memref<32x32xbf16, #tpu.memory_space<vmem>>, %arg10: memref<1x32xf32, #tpu.memory_space<vmem>>, %arg11: memref<1x32xf32, #tpu.memory_space<vmem>>, %arg12: memref<1x32xf32, #tpu.memory_space<vmem>>, %arg13: memref<1x8x32xf32, #tpu.memory_space<vmem>>) attributes {dimension_semantics = [#tpu.dimension_semantics<parallel>, #tpu.dimension_semantics<parallel>], iteration_bounds = array<i64: 2, 1>, scalar_prefetch = 0 : i64, scratch_operands = 0 : i64, tpu.core_type = #tpu.core_type<tc>, window_params = [{transform_indices = @transform_0, window_bounds = array<i64: 1, 8, 32>}, {pipeline_mode = #tpu.pipeline_mode<synchronous>, transform_indices = @transform_1, window_bounds = array<i64: 32, 32>}, {pipeline_mode = #tpu.pipeline_mode<synchronous>, transform_indices = @transform_2, window_bounds = array<i64: 1, 32>}, {pipeline_mode = #tpu.pipeline_mode<synchronous>, transform_indices = @transform_3, window_bounds = array<i64: 32, 32>}, {pipeline_mode = #tpu.pipeline_mode<synchronous>, transform_indices = @transform_4, window_bounds = array<i64: 1, 32>}, {pipeline_mode = #tpu.pipeline_mode<synchronous>, transform_indices = @transform_5, window_bounds = array<i64: 32, 32>}, {pipeline_mode = #tpu.pipeline_mode<synchronous>, transform_indices = @transform_6, window_bounds = array<i64: 1, 32>}, {pipeline_mode = #tpu.pipeline_mode<synchronous>, transform_indices = @transform_7, window_bounds = array<i64: 32, 32>}, {pipeline_mode = #tpu.pipeline_mode<synchronous>, transform_indices = @transform_8, window_bounds = array<i64: 1, 32>}, {pipeline_mode = #tpu.pipeline_mode<synchronous>, transform_indices = @transform_9, window_bounds = array<i64: 1, 32>}, {pipeline_mode = #tpu.pipeline_mode<synchronous>, transform_indices = @transform_10, window_bounds = array<i64: 1, 32>}, {transform_indices = @transform_11, window_bounds = array<i64: 1, 8, 32>}]} {
    %c0 = arith.constant 0 : index
    %c0_0 = arith.constant 0 : index
    %c0_1 = arith.constant 0 : index
    %0 = vector.load %arg2[%c0, %c0_0, %c0_1] : memref<1x8x32xf32, #tpu.memory_space<vmem>>, vector<1x8x32xf32>
    %1 = vector.shape_cast %0 : vector<1x8x32xf32> to vector<8x32xf32>
    %c0_2 = arith.constant 0 : index
    %c0_3 = arith.constant 0 : index
    %c0_4 = arith.constant 0 : index
    %2 = vector.load %arg2[%c0_2, %c0_3, %c0_4] : memref<1x8x32xf32, #tpu.memory_space<vmem>>, vector<1x8x32xf32>
    %3 = vector.shape_cast %2 : vector<1x8x32xf32> to vector<8x32xf32>
    %4 = arith.truncf %1 : vector<8x32xf32> to vector<8x32xbf16>
    %c0_5 = arith.constant 0 : index
    %c0_6 = arith.constant 0 : index
    %5 = vector.load %arg3[%c0_5, %c0_6] : memref<32x32xbf16, #tpu.memory_space<vmem>>, vector<32x32xbf16>
    %cst = arith.constant dense<0.000000e+00> : vector<8x32xf32>
    %6 = tpu.matmul %4, %5, %cst {dimension_numbers = #tpu.dot_dimension_numbers<[1], [0], [0], [1], [0, 0, 1, 1], [], []>} : vector<8x32xbf16>, vector<32x32xbf16>, vector<8x32xf32> -> vector<8x32xf32>
    %c0_7 = arith.constant 0 : index
    %c0_8 = arith.constant 0 : index
    %7 = vector.load %arg4[%c0_7, %c0_8] : memref<1x32xf32, #tpu.memory_space<vmem>>, vector<1x32xf32>
    %8 = vector.broadcast %7 : vector<1x32xf32> to vector<8x32xf32>
    %9 = arith.addf %6, %8 : vector<8x32xf32>
    %10 = arith.truncf %1 : vector<8x32xf32> to vector<8x32xbf16>
    %c0_9 = arith.constant 0 : index
    %c0_10 = arith.constant 0 : index
    %11 = vector.load %arg5[%c0_9, %c0_10] : memref<32x32xbf16, #tpu.memory_space<vmem>>, vector<32x32xbf16>
    %cst_11 = arith.constant dense<0.000000e+00> : vector<8x32xf32>
    %12 = tpu.matmul %10, %11, %cst_11 {dimension_numbers = #tpu.dot_dimension_numbers<[1], [0], [0], [1], [0, 0, 1, 1], [], []>} : vector<8x32xbf16>, vector<32x32xbf16>, vector<8x32xf32> -> vector<8x32xf32>
    %c0_12 = arith.constant 0 : index
    %c0_13 = arith.constant 0 : index
    %13 = vector.load %arg6[%c0_12, %c0_13] : memref<1x32xf32, #tpu.memory_space<vmem>>, vector<1x32xf32>
    %14 = vector.broadcast %13 : vector<1x32xf32> to vector<8x32xf32>
    %15 = arith.addf %12, %14 : vector<8x32xf32>
    %16 = arith.truncf %3 : vector<8x32xf32> to vector<8x32xbf16>
    %c0_14 = arith.constant 0 : index
    %c0_15 = arith.constant 0 : index
    %17 = vector.load %arg7[%c0_14, %c0_15] : memref<32x32xbf16, #tpu.memory_space<vmem>>, vector<32x32xbf16>
    %cst_16 = arith.constant dense<0.000000e+00> : vector<8x32xf32>
    %18 = tpu.matmul %16, %17, %cst_16 {dimension_numbers = #tpu.dot_dimension_numbers<[1], [0], [0], [1], [0, 0, 1, 1], [], []>} : vector<8x32xbf16>, vector<32x32xbf16>, vector<8x32xf32> -> vector<8x32xf32>
    %c0_17 = arith.constant 0 : index
    %c0_18 = arith.constant 0 : index
    %19 = vector.load %arg8[%c0_17, %c0_18] : memref<1x32xf32, #tpu.memory_space<vmem>>, vector<1x32xf32>
    %20 = vector.broadcast %19 : vector<1x32xf32> to vector<8x32xf32>
    %21 = arith.addf %18, %20 : vector<8x32xf32>
    %22 = arith.truncf %9 : vector<8x32xf32> to vector<8x32xbf16>
    %23 = vector.shape_cast %22 : vector<8x32xbf16> to vector<8x4x8xbf16>
    %24 = tpu.transpose %23, [1, 0, 2] : vector<8x4x8xbf16> -> vector<4x8x8xbf16>
    %25 = arith.truncf %15 : vector<8x32xf32> to vector<8x32xbf16>
    %26 = vector.shape_cast %25 : vector<8x32xbf16> to vector<8x4x8xbf16>
    %27 = tpu.transpose %26, [1, 0, 2] : vector<8x4x8xbf16> -> vector<4x8x8xbf16>
    %28 = arith.truncf %21 : vector<8x32xf32> to vector<8x32xbf16>
    %29 = vector.shape_cast %28 : vector<8x32xbf16> to vector<8x4x8xbf16>
    %30 = tpu.transpose %29, [1, 0, 2] : vector<8x4x8xbf16> -> vector<4x8x8xbf16>
    "tpu.trace_start"() <{level = 10 : i32, message = "hqd,hkd->hqk"}> : () -> ()
    %cst_19 = arith.constant dense<0.000000e+00> : vector<4x8x8xf32>
    %31 = tpu.matmul %24, %27, %cst_19 {dimension_numbers = #tpu.dot_dimension_numbers<[2], [2], [1], [1], [0, 0, 0, 1, 1, 1], [0], [0]>} : vector<4x8x8xbf16>, vector<4x8x8xbf16>, vector<4x8x8xf32> -> vector<4x8x8xf32>
    "tpu.trace_stop"() : () -> ()
    %cst_20 = arith.constant 0.353553385 : f32
    %32 = vector.broadcast %cst_20 : f32 to vector<4x8x8xf32>
    %33 = arith.mulf %31, %32 : vector<4x8x8xf32>
    %cst_21 = arith.constant dense<0xFF800000> : vector<4x8xf32>
    %34 = vector.multi_reduction <maximumf>, %33, %cst_21 [2] : vector<4x8x8xf32> to vector<4x8xf32>
    %35 = vector.shape_cast %34 : vector<4x8xf32> to vector<4x8x1xf32>
    %36 = vector.broadcast %35 : vector<4x8x1xf32> to vector<4x8x8xf32>
    %37 = arith.subf %33, %36 : vector<4x8x8xf32>
    %38 = math.exp %37 : vector<4x8x8xf32>
    %cst_22 = arith.constant dense<0.000000e+00> : vector<4x8xf32>
    %39 = vector.multi_reduction <add>, %38, %cst_22 [2] : vector<4x8x8xf32> to vector<4x8xf32>
    %40 = vector.shape_cast %39 : vector<4x8xf32> to vector<4x8x1xf32>
    %41 = vector.broadcast %40 : vector<4x8x1xf32> to vector<4x8x8xf32>
    %42 = arith.divf %38, %41 : vector<4x8x8xf32>
    %43 = arith.truncf %42 : vector<4x8x8xf32> to vector<4x8x8xbf16>
    "tpu.trace_start"() <{level = 10 : i32, message = "hqk,hkd->hqd"}> : () -> ()
    %cst_23 = arith.constant dense<0.000000e+00> : vector<4x8x8xf32>
    %44 = tpu.matmul %43, %30, %cst_23 {dimension_numbers = #tpu.dot_dimension_numbers<[2], [1], [1], [2], [0, 0, 0, 1, 1, 2], [0], [0]>} : vector<4x8x8xbf16>, vector<4x8x8xbf16>, vector<4x8x8xf32> -> vector<4x8x8xf32>
    "tpu.trace_stop"() : () -> ()
    %45 = tpu.transpose %44, [1, 0, 2] : vector<4x8x8xf32> -> vector<8x4x8xf32>
    %46 = vector.shape_cast %45 : vector<8x4x8xf32> to vector<8x32xf32>
    %47 = arith.truncf %46 : vector<8x32xf32> to vector<8x32xbf16>
    %c0_24 = arith.constant 0 : index
    %c0_25 = arith.constant 0 : index
    %48 = vector.load %arg9[%c0_24, %c0_25] : memref<32x32xbf16, #tpu.memory_space<vmem>>, vector<32x32xbf16>
    %cst_26 = arith.constant dense<0.000000e+00> : vector<8x32xf32>
    %49 = tpu.matmul %47, %48, %cst_26 {dimension_numbers = #tpu.dot_dimension_numbers<[1], [0], [0], [1], [0, 0, 1, 1], [], []>} : vector<8x32xbf16>, vector<32x32xbf16>, vector<8x32xf32> -> vector<8x32xf32>
    %c0_27 = arith.constant 0 : index
    %c0_28 = arith.constant 0 : index
    %50 = vector.load %arg10[%c0_27, %c0_28] : memref<1x32xf32, #tpu.memory_space<vmem>>, vector<1x32xf32>
    %51 = vector.broadcast %50 : vector<1x32xf32> to vector<8x32xf32>
    %52 = arith.addf %49, %51 : vector<8x32xf32>
    %cst_29 = arith.constant dense<0.000000e+00> : vector<8xf32>
    %53 = vector.multi_reduction <add>, %52, %cst_29 [1] : vector<8x32xf32> to vector<8xf32>
    %54 = vector.shape_cast %53 : vector<8xf32> to vector<8x1xf32>
    %cst_30 = arith.constant 3.200000e+01 : f32
    %55 = vector.broadcast %cst_30 : f32 to vector<8x1xf32>
    %56 = arith.divf %54, %55 : vector<8x1xf32>
    %57 = vector.broadcast %56 : vector<8x1xf32> to vector<8x32xf32>
    %58 = arith.subf %52, %57 : vector<8x32xf32>
    %59 = arith.mulf %58, %58 : vector<8x32xf32>
    %cst_31 = arith.constant dense<0.000000e+00> : vector<8xf32>
    %60 = vector.multi_reduction <add>, %59, %cst_31 [1] : vector<8x32xf32> to vector<8xf32>
    %61 = vector.shape_cast %60 : vector<8xf32> to vector<8x1xf32>
    %cst_32 = arith.constant 3.200000e+01 : f32
    %62 = vector.broadcast %cst_32 : f32 to vector<8x1xf32>
    %63 = arith.divf %61, %62 : vector<8x1xf32>
    %cst_33 = arith.constant 9.99999974E-6 : f32
    %64 = vector.broadcast %cst_33 : f32 to vector<8x1xf32>
    %65 = arith.addf %63, %64 : vector<8x1xf32>
    %66 = math.rsqrt %65 : vector<8x1xf32>
    %67 = vector.broadcast %66 : vector<8x1xf32> to vector<8x32xf32>
    %68 = arith.mulf %58, %67 : vector<8x32xf32>
    %c0_34 = arith.constant 0 : index
    %c0_35 = arith.constant 0 : index
    %69 = vector.load %arg11[%c0_34, %c0_35] : memref<1x32xf32, #tpu.memory_space<vmem>>, vector<1x32xf32>
    %70 = vector.broadcast %69 : vector<1x32xf32> to vector<8x32xf32>
    %71 = arith.mulf %68, %70 : vector<8x32xf32>
    %c0_36 = arith.constant 0 : index
    %c0_37 = arith.constant 0 : index
    %72 = vector.load %arg12[%c0_36, %c0_37] : memref<1x32xf32, #tpu.memory_space<vmem>>, vector<1x32xf32>
    %73 = vector.broadcast %72 : vector<1x32xf32> to vector<8x32xf32>
    %74 = arith.addf %71, %73 : vector<8x32xf32>
    %c0_38 = arith.constant 0 : index
    %c0_39 = arith.constant 0 : index
    %c0_40 = arith.constant 0 : index
    %75 = vector.load %arg13[%c0_38, %c0_39, %c0_40] : memref<1x8x32xf32, #tpu.memory_space<vmem>>, vector<1x8x32xf32>
    %76 = vector.shape_cast %75 : vector<1x8x32xf32> to vector<8x32xf32>
    %77 = vector.shape_cast %74 : vector<8x32xf32> to vector<1x8x32xf32>
    tpu.vector_store %arg13[%c0_38, %c0_39, %c0_40], %77 {strides = array<i32>} : memref<1x8x32xf32, #tpu.memory_space<vmem>>, vector<1x8x32xf32>,
    return
  }
  func.func @transform_0(%arg0: i32, %arg1: i32) -> (i32, i32, i32) {
    %c0_i32 = arith.constant 0 : i32
    %c0_i32_0 = arith.constant 0 : i32
    return %arg0, %arg1, %c0_i32 : i32, i32, i32
  }
  func.func @transform_1(%arg0: i32, %arg1: i32) -> (i32, i32) {
    %c0_i32 = arith.constant 0 : i32
    %c0_i32_0 = arith.constant 0 : i32
    %c0_i32_1 = arith.constant 0 : i32
    return %c0_i32, %c0_i32_0 : i32, i32
  }
  func.func @transform_2(%arg0: i32, %arg1: i32) -> (i32, i32) {
    %c0_i32 = arith.constant 0 : i32
    %c0_i32_0 = arith.constant 0 : i32
    %c0_i32_1 = arith.constant 0 : i32
    return %c0_i32, %c0_i32_0 : i32, i32
  }
  func.func @transform_3(%arg0: i32, %arg1: i32) -> (i32, i32) {
    %c0_i32 = arith.constant 0 : i32
    %c0_i32_0 = arith.constant 0 : i32
    %c0_i32_1 = arith.constant 0 : i32
    return %c0_i32, %c0_i32_0 : i32, i32
  }
  func.func @transform_4(%arg0: i32, %arg1: i32) -> (i32, i32) {
    %c0_i32 = arith.constant 0 : i32
    %c0_i32_0 = arith.constant 0 : i32
    %c0_i32_1 = arith.constant 0 : i32
    return %c0_i32, %c0_i32_0 : i32, i32
  }
  func.func @transform_5(%arg0: i32, %arg1: i32) -> (i32, i32) {
    %c0_i32 = arith.constant 0 : i32
    %c0_i32_0 = arith.constant 0 : i32
    %c0_i32_1 = arith.constant 0 : i32
    return %c0_i32, %c0_i32_0 : i32, i32
  }
  func.func @transform_6(%arg0: i32, %arg1: i32) -> (i32, i32) {
    %c0_i32 = arith.constant 0 : i32
    %c0_i32_0 = arith.constant 0 : i32
    %c0_i32_1 = arith.constant 0 : i32
    return %c0_i32, %c0_i32_0 : i32, i32
  }
  func.func @transform_7(%arg0: i32, %arg1: i32) -> (i32, i32) {
    %c0_i32 = arith.constant 0 : i32
    %c0_i32_0 = arith.constant 0 : i32
    %c0_i32_1 = arith.constant 0 : i32
    return %c0_i32, %c0_i32_0 : i32, i32
  }
  func.func @transform_8(%arg0: i32, %arg1: i32) -> (i32, i32) {
    %c0_i32 = arith.constant 0 : i32
    %c0_i32_0 = arith.constant 0 : i32
    %c0_i32_1 = arith.constant 0 : i32
    return %c0_i32, %c0_i32_0 : i32, i32
  }
  func.func @transform_9(%arg0: i32, %arg1: i32) -> (i32, i32) {
    %c0_i32 = arith.constant 0 : i32
    %c0_i32_0 = arith.constant 0 : i32
    %c0_i32_1 = arith.constant 0 : i32
    return %c0_i32, %c0_i32_0 : i32, i32
  }
  func.func @transform_10(%arg0: i32, %arg1: i32) -> (i32, i32) {
    %c0_i32 = arith.constant 0 : i32
    %c0_i32_0 = arith.constant 0 : i32
    %c0_i32_1 = arith.constant 0 : i32
    return %c0_i32, %c0_i32_0 : i32, i32
  }
  func.func @transform_11(%arg0: i32, %arg1: i32) -> (i32, i32, i32) {
    %c0_i32 = arith.constant 0 : i32
    %c0_i32_0 = arith.constant 0 : i32
    return %arg0, %arg1, %c0_i32 : i32, i32, i32
  }
}

</mosaic_0001>

<llo_original>
// kernel: tpu_custom_call.1
$region0: #{tpu_custom_call.1}
  #allocation0 [shape = 'u32[]', space=smem, size = 0x4, offset = 0x4, fixed_abs, tag = 'smem constant byte address 0x4 - core index']
  #allocation1 [shape = 'u32[144,128]{1,0:T(1,128)}', space=vmem, size = 0x12000, scoped, tag = 'internal scratch']
  %s0 = inlined_call_operand.hbm [shape: f32[2,8,32], index: 0, kind: input, shape index: {}]
  %s1 = inlined_call_operand.hbm [shape: bf16[32,32], index: 1, kind: input, shape index: {}]
  %s2 = inlined_call_operand.vmem [shape: f32[1,32], index: 2, kind: input, shape index: {}]
  %s3 = inlined_call_operand.hbm [shape: bf16[32,32], index: 3, kind: input, shape index: {}]
  %s4 = inlined_call_operand.vmem [shape: f32[1,32], index: 4, kind: input, shape index: {}]
  %s5 = inlined_call_operand.vmem [shape: bf16[32,32], index: 5, kind: input, shape index: {}]
  %s6 = inlined_call_operand.vmem [shape: f32[1,32], index: 6, kind: input, shape index: {}]
  %s7 = inlined_call_operand.hbm [shape: bf16[32,32], index: 7, kind: input, shape index: {}]
  %s8 = inlined_call_operand.vmem [shape: f32[1,32], index: 8, kind: input, shape index: {}]
  %s9 = inlined_call_operand.vmem [shape: f32[1,32], index: 9, kind: input, shape index: {}]
  %s10 = inlined_call_operand.vmem [shape: f32[1,32], index: 10, kind: input, shape index: {}]
  %s11 = inlined_call_operand.hbm [shape: f32[2,8,32], index: 11, kind: output, shape index: {}]
  %s12 = sld [smem:[#allocation0]]
  $region93: #{tpu_custom_call.1} parent=0
    _
  %s14 = ssub.s32 1, %s12
  %s15 = scalar_select 0, %s14, %s12
  $region1: #{tpu_custom_call.1} parent=0
    #allocation2 [shape = 'u8[8192]{0}', space=vmem, size = 0x2000, scoped, tag = 'input window, operand 0']
    #allocation3 [shape = 's32[2]{0}', space=sflag, size = 0x8, scoped, tag = 'scoped memory for tpu_custom_call.1']
    #allocation4 [shape = 's32[2]{0}', space=sflag, size = 0x8, scoped, tag = 'scoped memory for tpu_custom_call.1']
    #allocation5 [shape = 'u8[8192]{0}', space=vmem, size = 0x2000, scoped, tag = 'input window, operand 1, single buffered']
    #allocation6 [shape = 's32[1]{0}', space=sflag, size = 0x4, scoped, tag = 'scoped memory for tpu_custom_call.1']
    #allocation7 [shape = 'u8[8192]{0}', space=vmem, size = 0x2000, scoped, tag = 'input window, operand 3, single buffered']
    #allocation8 [shape = 'u8[8192]{0}', space=vmem, size = 0x2000, scoped, tag = 'input window, operand 7, single buffered']
    #allocation9 [shape = 's32[1]{0}', space=sflag, size = 0x4, scoped, tag = 'scoped memory for tpu_custom_call.1']
    #allocation10 [shape = 'u8[8192]{0}', space=vmem, size = 0x2000, scoped, tag = 'output window, operand 0']
    %16 = vsyncpa [#allocation3], 0
    %s17 = scalar_lea.sflag [#allocation3], 1
    %18 = vsyncpa %s17, 0
    %19 = vsyncpa [#allocation6], 0
    %20 = vsyncpa [#allocation9], 0
    %21 = vsyncpa [#allocation4], 0
    %s22 = scalar_lea.sflag [#allocation4], 1
    %23 = vsyncpa %s22, 0
    loop: start=0, step=1, limit=4
    $region2: #{tpu_custom_call.1} parent=1 // loop_pre_header
      _
    $region3: #{tpu_custom_call.1} parent=1 // loop_header
      %s25 = sphi 0, %s29
      %p26 = scmp.ge.s32.totalorder %s25, 4
      %s32 = sphi 0, %s44
      %s33 = sphi 0, %s40
      %s34 = sphi 0, %s32
      %s35 = sphi 0, %s33
      %s36 = sphi 0, %s34
      %s37 = sphi 0, %s35
      %s49 = sphi 0, %s51
      %s52 = sphi 0, %s49
      %s53 = sphi 0, %s52
      %s69 = sphi 0, %s53
      %s73 = sphi 0, %s73
      %s75 = sphi 0, %s73
      %s76 = sphi 0, %s75
      %s90 = sphi 0, %s76
      %s94 = sphi 0, %s94
      %s96 = sphi 0, %s94
      %s97 = sphi 0, %s96
      %s111 = sphi 0, %s97
      %s115 = sphi 0, %s115
      %s117 = sphi 0, %s115
      %s118 = sphi 0, %s117
      %s132 = sphi 0, %s118
      %s136 = sphi 0, %s136
      %s138 = sphi 0, %s136
      %s139 = sphi 0, %s138
      %s153 = sphi 0, %s139
      %s157 = sphi 0, %s157
      %s159 = sphi 0, %s157
      %s160 = sphi 0, %s159
      %s174 = sphi 0, %s160
      %s178 = sphi 0, %s178
      %s180 = sphi 0, %s178
      %s181 = sphi 0, %s180
      %s195 = sphi 0, %s181
      %s199 = sphi 0, %s199
      %s201 = sphi 0, %s199
      %s202 = sphi 0, %s201
      %s216 = sphi 0, %s202
      %s220 = sphi 0, %s220
      %s222 = sphi 0, %s220
      %s223 = sphi 0, %s222
      %s237 = sphi 0, %s223
      %s241 = sphi 0, %s241
      %s243 = sphi 0, %s241
      %s244 = sphi 0, %s243
      %s258 = sphi 0, %s244
      %s262 = sphi 0, %s262
      %s264 = sphi 0, %s262
      %s265 = sphi 0, %s264
      %s279 = sphi 0, %s265
      %s287 = sphi 0, %s289
      %s290 = sphi 0, %s287
      %s291 = sphi 0, %s290
      %s307 = sphi 0, %s291
    $region4: #{tpu_custom_call.1} parent=1 // loop_header_branch
      %28 = sbr.rel (%p26) target = $region8
    $region5: #{tpu_custom_call.1} parent=1 // loop_body
      %s30 = ssub.s32 %s25, 1
      %s31 = ssub.s32 %s25, 2
      %s38 = sadd.s32 1, %s33
      %p39 = scmp.ge.s32.totalorder %s38, 1
      %s40 = scalar_select %p39, 0, %s38
      %s41 = sadd.s32 1, %s32
      %s42 = scalar_select %p39, %s41, %s32
      %p43 = scmp.ge.s32.totalorder %s42, 2
      %s44 = scalar_select %p43, 0, %s42
      %s45 = ssub.s32 %s32, %s44
      %s46 = ssub.s32 %s33, %s40
      %s47 = sor.u32 %s45, %s46
      %p48 = scmp.eq.s32.totalorder %s47, 0
      %s50 = sadd.s32 %s49, 1
      %s51 = scalar_select %p48, %s49, %s50
      %p54 = pneg %p48
      %p55 = scmp.eq.s32.totalorder %s25, 1
      %p56 = por %p54, %p55
      %p57 = scmp.ne.s32.totalorder %s49, %s52
      %p58 = scmp.eq.s32.totalorder %s25, 0
      %p59 = por %p57, %p58
      %p60 = scmp.ne.s32.totalorder %s49, %s52
      %p61 = scmp.eq.s32.totalorder %s30, 1
      %p62 = por %p60, %p61
      %p63 = scmp.ne.s32.totalorder %s52, %s53
      %p64 = scmp.eq.s32.totalorder %s30, 0
      %p65 = por %p63, %p64
      %p66 = scmp.ne.s32.totalorder %s52, %s53
      %p67 = scmp.eq.s32.totalorder %s31, 1
      %p68 = por %p66, %p67
      %p70 = scmp.ne.s32.totalorder %s53, %s69
      %p71 = scmp.eq.s32.totalorder %s31, 0
      %p72 = por %p70, %p71
      %s74 = sadd.s32 %s73, 1
      %p77 = scmp.eq.s32.totalorder %s25, 1
      %p78 = scmp.ne.s32.totalorder %s73, %s75
      %p79 = scmp.eq.s32.totalorder %s25, 0
      %p80 = por %p78, %p79
      %p81 = scmp.ne.s32.totalorder %s73, %s75
      %p82 = scmp.eq.s32.totalorder %s30, 1
      %p83 = por %p81, %p82
      %p84 = scmp.ne.s32.totalorder %s75, %s76
      %p85 = scmp.eq.s32.totalorder %s30, 0
      %p86 = por %p84, %p85
      %p87 = scmp.ne.s32.totalorder %s75, %s76
      %p88 = scmp.eq.s32.totalorder %s31, 1
      %p89 = por %p87, %p88
      %p91 = scmp.ne.s32.totalorder %s76, %s90
      %p92 = scmp.eq.s32.totalorder %s31, 0
      %p93 = por %p91, %p92
      %s95 = sadd.s32 %s94, 1
      %p98 = scmp.eq.s32.totalorder %s25, 1
      %p99 = scmp.ne.s32.totalorder %s94, %s96
      %p100 = scmp.eq.s32.totalorder %s25, 0
      %p101 = por %p99, %p100
      %p102 = scmp.ne.s32.totalorder %s94, %s96
      %p103 = scmp.eq.s32.totalorder %s30, 1
      %p104 = por %p102, %p103
      %p105 = scmp.ne.s32.totalorder %s96, %s97
      %p106 = scmp.eq.s32.totalorder %s30, 0
      %p107 = por %p105, %p106
      %p108 = scmp.ne.s32.totalorder %s96, %s97
      %p109 = scmp.eq.s32.totalorder %s31, 1
      %p110 = por %p108, %p109
      %p112 = scmp.ne.s32.totalorder %s97, %s111
      %p113 = scmp.eq.s32.totalorder %s31, 0
      %p114 = por %p112, %p113
      %s116 = sadd.s32 %s115, 1
      %p119 = scmp.eq.s32.totalorder %s25, 1
      %p120 = scmp.ne.s32.totalorder %s115, %s117
      %p121 = scmp.eq.s32.totalorder %s25, 0
      %p122 = por %p120, %p121
      %p123 = scmp.ne.s32.totalorder %s115, %s117
      %p124 = scmp.eq.s32.totalorder %s30, 1
      %p125 = por %p123, %p124
      %p126 = scmp.ne.s32.totalorder %s117, %s118
      %p127 = scmp.eq.s32.totalorder %s30, 0
      %p128 = por %p126, %p127
      %p129 = scmp.ne.s32.totalorder %s117, %s118
      %p130 = scmp.eq.s32.totalorder %s31, 1
      %p131 = por %p129, %p130
      %p133 = scmp.ne.s32.totalorder %s118, %s132
      %p134 = scmp.eq.s32.totalorder %s31, 0
      %p135 = por %p133, %p134
      %s137 = sadd.s32 %s136, 1
      %p140 = scmp.eq.s32.totalorder %s25, 1
      %p141 = scmp.ne.s32.totalorder %s136, %s138
      %p142 = scmp.eq.s32.totalorder %s25, 0
      %p143 = por %p141, %p142
      %p144 = scmp.ne.s32.totalorder %s136, %s138
      %p145 = scmp.eq.s32.totalorder %s30, 1
      %p146 = por %p144, %p145
      %p147 = scmp.ne.s32.totalorder %s138, %s139
      %p148 = scmp.eq.s32.totalorder %s30, 0
      %p149 = por %p147, %p148
      %p150 = scmp.ne.s32.totalorder %s138, %s139
      %p151 = scmp.eq.s32.totalorder %s31, 1
      %p152 = por %p150, %p151
      %p154 = scmp.ne.s32.totalorder %s139, %s153
      %p155 = scmp.eq.s32.totalorder %s31, 0
      %p156 = por %p154, %p155
      %s158 = sadd.s32 %s157, 1
      %p161 = scmp.eq.s32.totalorder %s25, 1
      %p162 = scmp.ne.s32.totalorder %s157, %s159
      %p163 = scmp.eq.s32.totalorder %s25, 0
      %p164 = por %p162, %p163
      %p165 = scmp.ne.s32.totalorder %s157, %s159
      %p166 = scmp.eq.s32.totalorder %s30, 1
      %p167 = por %p165, %p166
      %p168 = scmp.ne.s32.totalorder %s159, %s160
      %p169 = scmp.eq.s32.totalorder %s30, 0
      %p170 = por %p168, %p169
      %p171 = scmp.ne.s32.totalorder %s159, %s160
      %p172 = scmp.eq.s32.totalorder %s31, 1
      %p173 = por %p171, %p172
      %p175 = scmp.ne.s32.totalorder %s160, %s174
      %p176 = scmp.eq.s32.totalorder %s31, 0
      %p177 = por %p175, %p176
      %s179 = sadd.s32 %s178, 1
      %p182 = scmp.eq.s32.totalorder %s25, 1
      %p183 = scmp.ne.s32.totalorder %s178, %s180
      %p184 = scmp.eq.s32.totalorder %s25, 0
      %p185 = por %p183, %p184
      %p186 = scmp.ne.s32.totalorder %s178, %s180
      %p187 = scmp.eq.s32.totalorder %s30, 1
      %p188 = por %p186, %p187
      %p189 = scmp.ne.s32.totalorder %s180, %s181
      %p190 = scmp.eq.s32.totalorder %s30, 0
      %p191 = por %p189, %p190
      %p192 = scmp.ne.s32.totalorder %s180, %s181
      %p193 = scmp.eq.s32.totalorder %s31, 1
      %p194 = por %p192, %p193
      %p196 = scmp.ne.s32.totalorder %s181, %s195
      %p197 = scmp.eq.s32.totalorder %s31, 0
      %p198 = por %p196, %p197
      %s200 = sadd.s32 %s199, 1
      %p203 = scmp.eq.s32.totalorder %s25, 1
      %p204 = scmp.ne.s32.totalorder %s199, %s201
      %p205 = scmp.eq.s32.totalorder %s25, 0
      %p206 = por %p204, %p205
      %p207 = scmp.ne.s32.totalorder %s199, %s201
      %p208 = scmp.eq.s32.totalorder %s30, 1
      %p209 = por %p207, %p208
      %p210 = scmp.ne.s32.totalorder %s201, %s202
      %p211 = scmp.eq.s32.totalorder %s30, 0
      %p212 = por %p210, %p211
      %p213 = scmp.ne.s32.totalorder %s201, %s202
      %p214 = scmp.eq.s32.totalorder %s31, 1
      %p215 = por %p213, %p214
      %p217 = scmp.ne.s32.totalorder %s202, %s216
      %p218 = scmp.eq.s32.totalorder %s31, 0
      %p219 = por %p217, %p218
      %s221 = sadd.s32 %s220, 1
      %p224 = scmp.eq.s32.totalorder %s25, 1
      %p225 = scmp.ne.s32.totalorder %s220, %s222
      %p226 = scmp.eq.s32.totalorder %s25, 0
      %p227 = por %p225, %p226
      %p228 = scmp.ne.s32.totalorder %s220, %s222
      %p229 = scmp.eq.s32.totalorder %s30, 1
      %p230 = por %p228, %p229
      %p231 = scmp.ne.s32.totalorder %s222, %s223
      %p232 = scmp.eq.s32.totalorder %s30, 0
      %p233 = por %p231, %p232
      %p234 = scmp.ne.s32.totalorder %s222, %s223
      %p235 = scmp.eq.s32.totalorder %s31, 1
      %p236 = por %p234, %p235
      %p238 = scmp.ne.s32.totalorder %s223, %s237
      %p239 = scmp.eq.s32.totalorder %s31, 0
      %p240 = por %p238, %p239
      %s242 = sadd.s32 %s241, 1
      %p245 = scmp.eq.s32.totalorder %s25, 1
      %p246 = scmp.ne.s32.totalorder %s241, %s243
      %p247 = scmp.eq.s32.totalorder %s25, 0
      %p248 = por %p246, %p247
      %p249 = scmp.ne.s32.totalorder %s241, %s243
      %p250 = scmp.eq.s32.totalorder %s30, 1
      %p251 = por %p249, %p250
      %p252 = scmp.ne.s32.totalorder %s243, %s244
      %p253 = scmp.eq.s32.totalorder %s30, 0
      %p254 = por %p252, %p253
      %p255 = scmp.ne.s32.totalorder %s243, %s244
      %p256 = scmp.eq.s32.totalorder %s31, 1
      %p257 = por %p255, %p256
      %p259 = scmp.ne.s32.totalorder %s244, %s258
      %p260 = scmp.eq.s32.totalorder %s31, 0
      %p261 = por %p259, %p260
      %s263 = sadd.s32 %s262, 1
      %p266 = scmp.eq.s32.totalorder %s25, 1
      %p267 = scmp.ne.s32.totalorder %s262, %s264
      %p268 = scmp.eq.s32.totalorder %s25, 0
      %p269 = por %p267, %p268
      %p270 = scmp.ne.s32.totalorder %s262, %s264
      %p271 = scmp.eq.s32.totalorder %s30, 1
      %p272 = por %p270, %p271
      %p273 = scmp.ne.s32.totalorder %s264, %s265
      %p274 = scmp.eq.s32.totalorder %s30, 0
      %p275 = por %p273, %p274
      %p276 = scmp.ne.s32.totalorder %s264, %s265
      %p277 = scmp.eq.s32.totalorder %s31, 1
      %p278 = por %p276, %p277
      %p280 = scmp.ne.s32.totalorder %s265, %s279
      %p281 = scmp.eq.s32.totalorder %s31, 0
      %p282 = por %p280, %p281
      %s283 = ssub.s32 %s32, %s44
      %s284 = ssub.s32 %s33, %s40
      %s285 = sor.u32 %s283, %s284
      %p286 = scmp.eq.s32.totalorder %s285, 0
      %s288 = sadd.s32 %s287, 1
      %s289 = scalar_select %p286, %s287, %s288
      %p292 = pneg %p286
      %p293 = scmp.eq.s32.totalorder %s25, 1
      %p294 = por %p292, %p293
      %p295 = scmp.ne.s32.totalorder %s287, %s290
      %p296 = scmp.eq.s32.totalorder %s25, 0
      %p297 = por %p295, %p296
      %p298 = scmp.ne.s32.totalorder %s287, %s290
      %p299 = scmp.eq.s32.totalorder %s30, 1
      %p300 = por %p298, %p299
      %p301 = scmp.ne.s32.totalorder %s290, %s291
      %p302 = scmp.eq.s32.totalorder %s30, 0
      %p303 = por %p301, %p302
      %p304 = scmp.ne.s32.totalorder %s290, %s291
      %p305 = scmp.eq.s32.totalorder %s31, 1
      %p306 = por %p304, %p305
      %p308 = scmp.ne.s32.totalorder %s291, %s307
      %p309 = scmp.eq.s32.totalorder %s31, 0
      %p310 = por %p308, %p309
      %p311 = scmp.le.s32.totalorder 1, %s25
      %p312 = scmp.lt.s32.totalorder %s25, 3
      %p313 = pnand %p311, %p312
      %p314 = pneg %p313
      // Predicated region
      $region9: #{tpu_custom_call.1} parent=5 // pred_check
        _
      $region10: #{tpu_custom_call.1} parent=5 // pred_check_branch
        %316 = sbr.rel (%p313) target = $region12
      $region11: #{tpu_custom_call.1} parent=5 // pred_region
        %s317 = ssub.s32 %s25, 1
        // Predicated region
        $region13: #{tpu_custom_call.1} parent=11 // pred_check
          %p318 = pneg %p86
        $region14: #{tpu_custom_call.1} parent=11 // pred_check_branch
          %320 = sbr.rel (%p318) target = $region16
        $region15: #{tpu_custom_call.1} parent=11 // pred_region
          %s322 = ssub.s32 256, 256
          %323 = vsyncadd [#allocation6], %s322
          %s324 = sshll.u32 [#allocation5], 4
          %s325 = int_to_ptr.vmem [resolvable:$true] %s324
          %330 = dma.hbm_to_vmem [thread:$0]  %s1, 256, %s325, [#allocation6], 64, 64, 4
        $region16: #{tpu_custom_call.1} parent=11 // pred_fallthru
          _
        // Predicated region
        $region17: #{tpu_custom_call.1} parent=11 // pred_check
          %p331 = pneg %p107
        $region18: #{tpu_custom_call.1} parent=11 // pred_check_branch
          %333 = sbr.rel (%p331) target = $region20
        $region19: #{tpu_custom_call.1} parent=11 // pred_region
          _
        $region20: #{tpu_custom_call.1} parent=11 // pred_fallthru
          _
        // Predicated region
        $region21: #{tpu_custom_call.1} parent=11 // pred_check
          %p334 = pneg %p128
        $region22: #{tpu_custom_call.1} parent=11 // pred_check_branch
          %336 = sbr.rel (%p334) target = $region24
        $region23: #{tpu_custom_call.1} parent=11 // pred_region
          %s338 = ssub.s32 256, 256
          %339 = vsyncadd [#allocation6], %s338
          %s340 = sshll.u32 [#allocation7], 4
          %s341 = int_to_ptr.vmem [resolvable:$true] %s340
          %346 = dma.hbm_to_vmem [thread:$0]  %s3, 256, %s341, [#allocation6], 64, 64, 4
        $region24: #{tpu_custom_call.1} parent=11 // pred_fallthru
          _
        // Predicated region
        $region25: #{tpu_custom_call.1} parent=11 // pred_check
          %p347 = pneg %p149
        $region26: #{tpu_custom_call.1} parent=11 // pred_check_branch
          %349 = sbr.rel (%p347) target = $region28
        $region27: #{tpu_custom_call.1} parent=11 // pred_region
          _
        $region28: #{tpu_custom_call.1} parent=11 // pred_fallthru
          _
        // Predicated region
        $region29: #{tpu_custom_call.1} parent=11 // pred_check
          %p350 = pneg %p170
        $region30: #{tpu_custom_call.1} parent=11 // pred_check_branch
          %352 = sbr.rel (%p350) target = $region32
        $region31: #{tpu_custom_call.1} parent=11 // pred_region
          _
        $region32: #{tpu_custom_call.1} parent=11 // pred_fallthru
          _
        // Predicated region
        $region33: #{tpu_custom_call.1} parent=11 // pred_check
          %p353 = pneg %p191
        $region34: #{tpu_custom_call.1} parent=11 // pred_check_branch
          %355 = sbr.rel (%p353) target = $region36
        $region35: #{tpu_custom_call.1} parent=11 // pred_region
          _
        $region36: #{tpu_custom_call.1} parent=11 // pred_fallthru
          _
        // Predicated region
        $region37: #{tpu_custom_call.1} parent=11 // pred_check
          %p356 = pneg %p212
        $region38: #{tpu_custom_call.1} parent=11 // pred_check_branch
          %358 = sbr.rel (%p356) target = $region40
        $region39: #{tpu_custom_call.1} parent=11 // pred_region
          %s360 = ssub.s32 256, 256
          %361 = vsyncadd [#allocation9], %s360
          %s362 = sshll.u32 [#allocation8], 4
          %s363 = int_to_ptr.vmem [resolvable:$true] %s362
          %368 = dma.hbm_to_vmem [thread:$0]  %s7, 256, %s363, [#allocation9], 64, 64, 4
        $region40: #{tpu_custom_call.1} parent=11 // pred_fallthru
          _
        // Predicated region
        $region41: #{tpu_custom_call.1} parent=11 // pred_check
          %p369 = pneg %p233
        $region42: #{tpu_custom_call.1} parent=11 // pred_check_branch
          %371 = sbr.rel (%p369) target = $region44
        $region43: #{tpu_custom_call.1} parent=11 // pred_region
          _
        $region44: #{tpu_custom_call.1} parent=11 // pred_fallthru
          _
        // Predicated region
        $region45: #{tpu_custom_call.1} parent=11 // pred_check
          %p372 = pneg %p254
        $region46: #{tpu_custom_call.1} parent=11 // pred_check_branch
          %374 = sbr.rel (%p372) target = $region48
        $region47: #{tpu_custom_call.1} parent=11 // pred_region
          _
        $region48: #{tpu_custom_call.1} parent=11 // pred_fallthru
          _
        // Predicated region
        $region49: #{tpu_custom_call.1} parent=11 // pred_check
          %p375 = pneg %p275
        $region50: #{tpu_custom_call.1} parent=11 // pred_check_branch
          %377 = sbr.rel (%p375) target = $region52
        $region51: #{tpu_custom_call.1} parent=11 // pred_region
          _
        $region52: #{tpu_custom_call.1} parent=11 // pred_fallthru
          _
      $region12: #{tpu_custom_call.1} parent=5 // pred_fallthru
        _
      %p378 = scmp.lt.s32.totalorder %s25, 2
      // Predicated region
      $region53: #{tpu_custom_call.1} parent=5 // pred_check
        %p379 = pneg %p378
      $region54: #{tpu_custom_call.1} parent=5 // pred_check_branch
        %381 = sbr.rel (%p379) target = $region56
      $region55: #{tpu_custom_call.1} parent=5 // pred_region
        // Predicated region
        $region57: #{tpu_custom_call.1} parent=55 // pred_check
          %p382 = pneg %p59
        $region58: #{tpu_custom_call.1} parent=55 // pred_check_branch
          %384 = sbr.rel (%p382) target = $region60
        $region59: #{tpu_custom_call.1} parent=55 // pred_region
          %s385 = sand.u32 %s49, 1
          %s386 = scalar_lea.sflag [#allocation3], %s385
          %s387 = sand.u32 %s49, 1
          %s388 = smul.addr %s387, 8
          %s389 = scalar_lea.vmem [#allocation2], %s388
          %s391 = ssub.s32 128, 128
          %392 = vsyncadd %s386, %s391
          %s393 = sadd.s32 %s33, %s32
          %s394 = smul.addr %s393, 128
          %s395 = scalar_lea.hbm %s0, %s394
          %s397 = sshll.u32 %s389, 4
          %s398 = int_to_ptr.vmem [resolvable:$true] %s397
          %400 = dma.hbm_to_vmem [thread:$0]  %s395, 128, %s398, %s386
        $region60: #{tpu_custom_call.1} parent=55 // pred_fallthru
          _
      $region56: #{tpu_custom_call.1} parent=5 // pred_fallthru
        _
      %p401 = scmp.le.s32.totalorder 1, %s25
      %p402 = scmp.lt.s32.totalorder %s25, 3
      %p403 = pnand %p401, %p402
      %p404 = pneg %p403
      // Predicated region
      $region61: #{tpu_custom_call.1} parent=5 // pred_check
        _
      $region62: #{tpu_custom_call.1} parent=5 // pred_check_branch
        %406 = sbr.rel (%p403) target = $region64
      $region63: #{tpu_custom_call.1} parent=5 // pred_region
        %s407 = ssub.s32 %s25, 1
        %s408 = sand.u32 %s52, 1
        %s409 = scalar_lea.sflag [#allocation3], %s408
        %s410 = sand.u32 %s52, 1
        %s411 = smul.addr %s410, 8
        %s412 = scalar_lea.vmem [#allocation2], %s411
        // Predicated region
        $region65: #{tpu_custom_call.1} parent=63 // pred_check
          %p413 = pneg %p65
        $region66: #{tpu_custom_call.1} parent=63 // pred_check_branch
          %415 = sbr.rel (%p413) target = $region68
        $region67: #{tpu_custom_call.1} parent=63 // pred_region
          %416 = dma.done %s409, 128
        $region68: #{tpu_custom_call.1} parent=63 // pred_fallthru
          _
        // Predicated region
        $region69: #{tpu_custom_call.1} parent=63 // pred_check
          %p417 = pneg %p86
        $region70: #{tpu_custom_call.1} parent=63 // pred_check_branch
          %419 = sbr.rel (%p417) target = $region72
        $region71: #{tpu_custom_call.1} parent=63 // pred_region
          %420 = dma.done [#allocation6], 256
        $region72: #{tpu_custom_call.1} parent=63 // pred_fallthru
          _
        // Predicated region
        $region73: #{tpu_custom_call.1} parent=63 // pred_check
          %p421 = pneg %p128
        $region74: #{tpu_custom_call.1} parent=63 // pred_check_branch
          %423 = sbr.rel (%p421) target = $region76
        $region75: #{tpu_custom_call.1} parent=63 // pred_region
          %424 = dma.done [#allocation6], 256
        $region76: #{tpu_custom_call.1} parent=63 // pred_fallthru
          _
        // Predicated region
        $region77: #{tpu_custom_call.1} parent=63 // pred_check
          %p425 = pneg %p212
        $region78: #{tpu_custom_call.1} parent=63 // pred_check_branch
          %427 = sbr.rel (%p425) target = $region80
        $region79: #{tpu_custom_call.1} parent=63 // pred_region
          %428 = dma.done [#allocation9], 256
        $region80: #{tpu_custom_call.1} parent=63 // pred_fallthru
          _
        %s429 = sand.u32 %s52, 1
        %s430 = scalar_lea.sflag [#allocation3], %s429
        %s431 = sand.u32 %s52, 1
        %s432 = smul.addr %s431, 8
        %s433 = scalar_lea.vmem [#allocation2], %s432
        %p434 = pneg %p65
        %p435 = pneg %p62
        %p436 = pneg %p86
        %p437 = pneg %p83
        %p438 = pneg %p107
        %p439 = pneg %p104
        %p440 = pneg %p128
        %p441 = pneg %p125
        %p442 = pneg %p149
        %p443 = pneg %p146
        %p444 = pneg %p170
        %p445 = pneg %p167
        %p446 = pneg %p191
        %p447 = pneg %p188
        %p448 = pneg %p212
        %p449 = pneg %p209
        %p450 = pneg %p233
        %p451 = pneg %p230
        %p452 = pneg %p254
        %p453 = pneg %p251
        %p454 = pneg %p275
        %p455 = pneg %p272
        %p456 = pneg %p303
        %p457 = pneg %p300
        %s458 = sand.u32 %s290, 1
        %s459 = scalar_lea.sflag [#allocation4], %s458
        %s460 = sand.u32 %s290, 1
        %s461 = smul.addr %s460, 8
        %s462 = scalar_lea.vmem [#allocation10], %s461
        %v464 = vld [vmem:[%s412] sm:$0xff]
        %v465 = vpack.c.bf16 %v464, %v464
        %v466 = vld [vmem:[#allocation5] sm:$0xf]
        %v467 = vld [vmem:[#allocation5 + $0x4] sm:$0xf]
        %v468 = vld [vmem:[#allocation5 + $0x8] sm:$0xf]
        %v469 = vld [vmem:[#allocation5 + $0xc] sm:$0xf]
        %v470 = vld [vmem:[%s2] sm:$0x1]
        %v472 = vlaneseq
        %v473 = vshrl.u32 %v472, 7
        %v474 = vsub.s32 0, %v473
        %v475 = vrot.slane %v470, %v474
        %v481 = vunpack.c.l.b16 %v466
        %v482 = vunpack.c.l.b16 %v467
        %v483 = vunpack.c.l.b16 %v468
        %v484 = vunpack.c.l.b16 %v469
        %v485 = vpack.c.b16 %v482, %v481
        %v486 = vpack.c.b16 %v484, %v483
        %vm489 = vcmask 261120
        %v491 = vsel %vm489, %v465, 0
        %493 = vmatprep.subr.bf16.mxu0 0
        %494 = vmatpush1.bf16.msra.mxu0 %v485
        %495 = vmatprep.subr.bf16.mxu0 0
        %496 = vmatpush1.bf16.msra.mxu0 %v486
        %497 = vmatprep.subr.bf16.mxu0 0
        %498 = vmatpush1.bf16.msra.mxu0 0
        %499 = vmatprep.subr.bf16.mxu0 0
        %500 = vmatpush1.bf16.msra.mxu0 0
        %501 = vmatprep.subr.bf16.mxu0 0
        %502 = vmatpush1.bf16.msra.mxu0 0
        %503 = vmatprep.subr.bf16.mxu0 0
        %504 = vmatpush1.bf16.msra.mxu0 0
        %505 = vmatprep.subr.bf16.mxu0 0
        %506 = vmatpush1.bf16.msra.mxu0 0
        %507 = vmatprep.subr.bf16.mxu0 0
        %508 = vmatpush1.bf16.msra.mxu0 0
        %509 = vmatprep.subr.bf16.mxu0 0
        %510 = vmatpush1.bf16.msra.mxu0 0
        %511 = vmatprep.subr.bf16.mxu0 0
        %512 = vmatpush1.bf16.msra.mxu0 0
        %513 = vmatprep.subr.bf16.mxu0 0
        %514 = vmatpush1.bf16.msra.mxu0 0
        %515 = vmatprep.subr.bf16.mxu0 0
        %516 = vmatpush1.bf16.msra.mxu0 0
        %517 = vmatprep.subr.bf16.mxu0 0
        %518 = vmatpush1.bf16.msra.mxu0 0
        %519 = vmatprep.subr.bf16.mxu0 0
        %520 = vmatpush1.bf16.msra.mxu0 0
        %521 = vmatprep.subr.bf16.mxu0 0
        %522 = vmatpush1.bf16.msra.mxu0 0
        %523 = vmatprep.subr.bf16.mxu0 0
        %524 = vmatpush1.bf16.msra.mxu0 0
        %525 = vmatprep.mubr.bf16.mxu0 0
        %526 = vmatmul.mubr.bf16.gmra.mrb[0].mxu0 %v491
        %v527 = vpop.f32.mrb[0].mxu0
        %v528 = vadd.f32 %v475, %v527
        %v529 = vpop.f32.mrb[0].mxu0
        %v530 = vpop.f32.mrb[0].mxu0
        %v531 = vpop.f32.mrb[0].mxu0
        %532 = vdwg.mxu0
        %v533 = vld [vmem:[#allocation7] sm:$0xf]
        %v534 = vld [vmem:[#allocation7 + $0x4] sm:$0xf]
        %v535 = vld [vmem:[#allocation7 + $0x8] sm:$0xf]
        %v536 = vld [vmem:[#allocation7 + $0xc] sm:$0xf]
        %v537 = vld [vmem:[%s4] sm:$0x1]
        %v539 = vlaneseq
        %v540 = vshrl.u32 %v539, 7
        %v541 = vsub.s32 0, %v540
        %v542 = vrot.slane %v537, %v541
        %v548 = vunpack.c.l.b16 %v533
        %v549 = vunpack.c.l.b16 %v534
        %v550 = vunpack.c.l.b16 %v535
        %v551 = vunpack.c.l.b16 %v536
        %v552 = vpack.c.b16 %v549, %v548
        %v553 = vpack.c.b16 %v551, %v550
        %556 = vmatprep.subr.bf16.mxu0 0
        %557 = vmatpush1.bf16.msra.mxu0 %v552
        %558 = vmatprep.subr.bf16.mxu0 0
        %559 = vmatpush1.bf16.msra.mxu0 %v553
        %560 = vmatprep.subr.bf16.mxu0 0
        %561 = vmatpush1.bf16.msra.mxu0 0
        %562 = vmatprep.subr.bf16.mxu0 0
        %563 = vmatpush1.bf16.msra.mxu0 0
        %564 = vmatprep.subr.bf16.mxu0 0
        %565 = vmatpush1.bf16.msra.mxu0 0
        %566 = vmatprep.subr.bf16.mxu0 0
        %567 = vmatpush1.bf16.msra.mxu0 0
        %568 = vmatprep.subr.bf16.mxu0 0
        %569 = vmatpush1.bf16.msra.mxu0 0
        %570 = vmatprep.subr.bf16.mxu0 0
        %571 = vmatpush1.bf16.msra.mxu0 0
        %572 = vmatprep.subr.bf16.mxu0 0
        %573 = vmatpush1.bf16.msra.mxu0 0
        %574 = vmatprep.subr.bf16.mxu0 0
        %575 = vmatpush1.bf16.msra.mxu0 0
        %576 = vmatprep.subr.bf16.mxu0 0
        %577 = vmatpush1.bf16.msra.mxu0 0
        %578 = vmatprep.subr.bf16.mxu0 0
        %579 = vmatpush1.bf16.msra.mxu0 0
        %580 = vmatprep.subr.bf16.mxu0 0
        %581 = vmatpush1.bf16.msra.mxu0 0
        %582 = vmatprep.subr.bf16.mxu0 0
        %583 = vmatpush1.bf16.msra.mxu0 0
        %584 = vmatprep.subr.bf16.mxu0 0
        %585 = vmatpush1.bf16.msra.mxu0 0
        %586 = vmatprep.subr.bf16.mxu0 0
        %587 = vmatpush1.bf16.msra.mxu0 0
        %588 = vmatprep.mubr.bf16.mxu0 0
        %589 = vmatmul.mubr.bf16.gmra.mrb[0].mxu0 %v491
        %v590 = vpop.f32.mrb[0].mxu0
        %v591 = vadd.f32 %v542, %v590
        %v592 = vpop.f32.mrb[0].mxu0
        %v593 = vpop.f32.mrb[0].mxu0
        %v594 = vpop.f32.mrb[0].mxu0
        %595 = vdwg.mxu0
        %v596 = vld [vmem:[%s5] sm:$0xf]
        %v597 = vld [vmem:[%s5 + $0x4] sm:$0xf]
        %v598 = vld [vmem:[%s5 + $0x8] sm:$0xf]
        %v599 = vld [vmem:[%s5 + $0xc] sm:$0xf]
        %v600 = vld [vmem:[%s6] sm:$0x1]
        %v602 = vlaneseq
        %v603 = vshrl.u32 %v602, 7
        %v604 = vsub.s32 0, %v603
        %v605 = vrot.slane %v600, %v604
        %v611 = vunpack.c.l.b16 %v596
        %v612 = vunpack.c.l.b16 %v597
        %v613 = vunpack.c.l.b16 %v598
        %v614 = vunpack.c.l.b16 %v599
        %v615 = vpack.c.b16 %v612, %v611
        %v616 = vpack.c.b16 %v614, %v613
        %619 = vmatprep.subr.bf16.mxu0 0
        %620 = vmatpush1.bf16.msra.mxu0 %v615
        %621 = vmatprep.subr.bf16.mxu0 0
        %622 = vmatpush1.bf16.msra.mxu0 %v616
        %623 = vmatprep.subr.bf16.mxu0 0
        %624 = vmatpush1.bf16.msra.mxu0 0
        %625 = vmatprep.subr.bf16.mxu0 0
        %626 = vmatpush1.bf16.msra.mxu0 0
        %627 = vmatprep.subr.bf16.mxu0 0
        %628 = vmatpush1.bf16.msra.mxu0 0
        %629 = vmatprep.subr.bf16.mxu0 0
        %630 = vmatpush1.bf16.msra.mxu0 0
        %631 = vmatprep.subr.bf16.mxu0 0
        %632 = vmatpush1.bf16.msra.mxu0 0
        %633 = vmatprep.subr.bf16.mxu0 0
        %634 = vmatpush1.bf16.msra.mxu0 0
        %635 = vmatprep.subr.bf16.mxu0 0
        %636 = vmatpush1.bf16.msra.mxu0 0
        %637 = vmatprep.subr.bf16.mxu0 0
        %638 = vmatpush1.bf16.msra.mxu0 0
        %639 = vmatprep.subr.bf16.mxu0 0
        %640 = vmatpush1.bf16.msra.mxu0 0
        %641 = vmatprep.subr.bf16.mxu0 0
        %642 = vmatpush1.bf16.msra.mxu0 0
        %643 = vmatprep.subr.bf16.mxu0 0
        %644 = vmatpush1.bf16.msra.mxu0 0
        %645 = vmatprep.subr.bf16.mxu0 0
        %646 = vmatpush1.bf16.msra.mxu0 0
        %647 = vmatprep.subr.bf16.mxu0 0
        %648 = vmatpush1.bf16.msra.mxu0 0
        %649 = vmatprep.subr.bf16.mxu0 0
        %650 = vmatpush1.bf16.msra.mxu0 0
        %651 = vmatprep.mubr.bf16.mxu0 0
        %652 = vmatmul.mubr.bf16.gmra.mrb[0].mxu0 %v491
        %v653 = vpop.f32.mrb[0].mxu0
        %v654 = vadd.f32 %v605, %v653
        %v655 = vpop.f32.mrb[0].mxu0
        %v656 = vpop.f32.mrb[0].mxu0
        %v657 = vpop.f32.mrb[0].mxu0
        %658 = vdwg.mxu0
        %v659 = vpack.c.bf16 %v528, %v528
        %661 = vrot.lane.b32.xlu0 %v659, 120
        %v662 = vpop.permute.xlu0 %661
        %663 = vrot.lane.b32.xlu0 %v659, 112
        %v664 = vpop.permute.xlu0 %663
        %665 = vrot.lane.b32.xlu0 %v659, 104
        %v666 = vpop.permute.xlu0 %665
        %v668 = vunpack.c.l.s4 1983009808
        %v669 = vunpack.c.0.s8 %v668
        %v670 = vlaneseq
        %v671 = vshrl.u32 %v670, 7
        %v672 = vsub.s32 %v669, %v671
        %v673 = vrot.slane %v659, %v672
        %v676 = vunpack.c.l.s4 1983009808
        %v677 = vunpack.c.0.s8 %v676
        %v678 = vlaneseq
        %v679 = vshrl.u32 %v678, 7
        %v680 = vsub.s32 %v677, %v679
        %v681 = vrot.slane %v664, %v680
        %v682 = vcombine.low %v673, %v681
        %v683 = vcombine.high %v673, %v681
        %v685 = vunpack.c.l.s4 1934713408
        %v686 = vunpack.c.0.s8 %v685
        %v687 = vlaneseq
        %v688 = vshrl.u32 %v687, 7
        %v689 = vsub.s32 %v686, %v688
        %v690 = vrot.slane %v682, %v689
        %v692 = vunpack.c.l.s4 1934713408
        %v693 = vunpack.c.0.s8 %v692
        %v694 = vlaneseq
        %v695 = vshrl.u32 %v694, 7
        %v696 = vsub.s32 %v693, %v695
        %v697 = vrot.slane %v683, %v696
        %v698 = vcombine.high %v690, 0
        %v699 = vcombine.high %v697, 0
        %v702 = vunpack.c.l.s4 1983009808
        %v703 = vunpack.c.0.s8 %v702
        %v704 = vlaneseq
        %v705 = vshrl.u32 %v704, 7
        %v706 = vsub.s32 %v703, %v705
        %v707 = vrot.slane %v662, %v706
        %v710 = vunpack.c.l.s4 1983009808
        %v711 = vunpack.c.0.s8 %v710
        %v712 = vlaneseq
        %v713 = vshrl.u32 %v712, 7
        %v714 = vsub.s32 %v711, %v713
        %v715 = vrot.slane %v666, %v714
        %v716 = vcombine.low %v707, %v715
        %v717 = vcombine.high %v707, %v715
        %v719 = vunpack.c.l.s4 1934713408
        %v720 = vunpack.c.0.s8 %v719
        %v721 = vlaneseq
        %v722 = vshrl.u32 %v721, 7
        %v723 = vsub.s32 %v720, %v722
        %v724 = vrot.slane %v716, %v723
        %v726 = vunpack.c.l.s4 1934713408
        %v727 = vunpack.c.0.s8 %v726
        %v728 = vlaneseq
        %v729 = vshrl.u32 %v728, 7
        %v730 = vsub.s32 %v727, %v729
        %v731 = vrot.slane %v717, %v730
        %v732 = vcombine.high %v724, 0
        %v733 = vcombine.high %v731, 0
        %v736 = vpack.i.b16 %v724, %v690
        %v738 = vshrl.u32 %v690, 16
        %v739 = vshrl.u32 %v724, 16
        %v740 = vpack.i.b16 %v739, %v738
        %v744 = vpack.i.b16 %v732, %v698
        %v746 = vshrl.u32 %v698, 16
        %v747 = vshrl.u32 %v732, 16
        %v748 = vpack.i.b16 %v747, %v746
        %v752 = vpack.i.b16 %v731, %v697
        %v754 = vshrl.u32 %v697, 16
        %v755 = vshrl.u32 %v731, 16
        %v756 = vpack.i.b16 %v755, %v754
        %v760 = vpack.i.b16 %v733, %v699
        %v762 = vshrl.u32 %v699, 16
        %v763 = vshrl.u32 %v733, 16
        %v764 = vpack.i.b16 %v763, %v762
        %v766 = vcombine.low %v736, %v752
        %v768 = vunpack.c.l.s4 1983009808
        %v769 = vunpack.c.0.s8 %v768
        %v770 = vlaneseq
        %v771 = vshrl.u32 %v770, 7
        %v772 = vsub.s32 %v769, %v771
        %v773 = vrot.slane %v766, %v772
        %v774 = vcombine.low %v744, %v760
        %v776 = vunpack.c.l.s4 1983009808
        %v777 = vunpack.c.0.s8 %v776
        %v778 = vlaneseq
        %v779 = vshrl.u32 %v778, 7
        %v780 = vsub.s32 %v777, %v779
        %v781 = vrot.slane %v774, %v780
        %v782 = vcombine.low %v773, %v781
        %v784 = vunpack.c.l.s4 1934713408
        %v785 = vunpack.c.0.s8 %v784
        %v786 = vlaneseq
        %v787 = vshrl.u32 %v786, 7
        %v788 = vsub.s32 %v785, %v787
        %v789 = vrot.slane %v782, %v788
        %v790 = vcombine.high %v789, 0
        %v791 = vcombine.low %v740, %v756
        %v793 = vunpack.c.l.s4 1983009808
        %v794 = vunpack.c.0.s8 %v793
        %v795 = vlaneseq
        %v796 = vshrl.u32 %v795, 7
        %v797 = vsub.s32 %v794, %v796
        %v798 = vrot.slane %v791, %v797
        %v799 = vcombine.low %v748, %v764
        %v801 = vunpack.c.l.s4 1983009808
        %v802 = vunpack.c.0.s8 %v801
        %v803 = vlaneseq
        %v804 = vshrl.u32 %v803, 7
        %v805 = vsub.s32 %v802, %v804
        %v806 = vrot.slane %v799, %v805
        %v807 = vcombine.low %v798, %v806
        %v809 = vunpack.c.l.s4 1934713408
        %v810 = vunpack.c.0.s8 %v809
        %v811 = vlaneseq
        %v812 = vshrl.u32 %v811, 7
        %v813 = vsub.s32 %v810, %v812
        %v814 = vrot.slane %v807, %v813
        %v815 = vcombine.high %v814, 0
        %v818 = vpack.i.b16 %v814, %v789
        %v819 = vshrl.u32 %v789, 16
        %v820 = vshrl.u32 %v814, 16
        %v821 = vpack.i.b16 %v820, %v819
        %v824 = vpack.i.b16 %v815, %v790
        %v825 = vshrl.u32 %v790, 16
        %v826 = vshrl.u32 %v815, 16
        %v827 = vpack.i.b16 %v826, %v825
        %v828 = vpack.c.bf16 %v591, %v591
        %830 = vrot.lane.b32.xlu0 %v828, 120
        %v831 = vpop.permute.xlu0 %830
        %832 = vrot.lane.b32.xlu0 %v828, 112
        %v833 = vpop.permute.xlu0 %832
        %834 = vrot.lane.b32.xlu0 %v828, 104
        %v835 = vpop.permute.xlu0 %834
        %v837 = vunpack.c.l.s4 1983009808
        %v838 = vunpack.c.0.s8 %v837
        %v839 = vlaneseq
        %v840 = vshrl.u32 %v839, 7
        %v841 = vsub.s32 %v838, %v840
        %v842 = vrot.slane %v828, %v841
        %v845 = vunpack.c.l.s4 1983009808
        %v846 = vunpack.c.0.s8 %v845
        %v847 = vlaneseq
        %v848 = vshrl.u32 %v847, 7
        %v849 = vsub.s32 %v846, %v848
        %v850 = vrot.slane %v833, %v849
        %v851 = vcombine.low %v842, %v850
        %v852 = vcombine.high %v842, %v850
        %v854 = vunpack.c.l.s4 1934713408
        %v855 = vunpack.c.0.s8 %v854
        %v856 = vlaneseq
        %v857 = vshrl.u32 %v856, 7
        %v858 = vsub.s32 %v855, %v857
        %v859 = vrot.slane %v851, %v858
        %v861 = vunpack.c.l.s4 1934713408
        %v862 = vunpack.c.0.s8 %v861
        %v863 = vlaneseq
        %v864 = vshrl.u32 %v863, 7
        %v865 = vsub.s32 %v862, %v864
        %v866 = vrot.slane %v852, %v865
        %v867 = vcombine.high %v859, 0
        %v868 = vcombine.high %v866, 0
        %v871 = vunpack.c.l.s4 1983009808
        %v872 = vunpack.c.0.s8 %v871
        %v873 = vlaneseq
        %v874 = vshrl.u32 %v873, 7
        %v875 = vsub.s32 %v872, %v874
        %v876 = vrot.slane %v831, %v875
        %v879 = vunpack.c.l.s4 1983009808
        %v880 = vunpack.c.0.s8 %v879
        %v881 = vlaneseq
        %v882 = vshrl.u32 %v881, 7
        %v883 = vsub.s32 %v880, %v882
        %v884 = vrot.slane %v835, %v883
        %v885 = vcombine.low %v876, %v884
        %v886 = vcombine.high %v876, %v884
        %v888 = vunpack.c.l.s4 1934713408
        %v889 = vunpack.c.0.s8 %v888
        %v890 = vlaneseq
        %v891 = vshrl.u32 %v890, 7
        %v892 = vsub.s32 %v889, %v891
        %v893 = vrot.slane %v885, %v892
        %v895 = vunpack.c.l.s4 1934713408
        %v896 = vunpack.c.0.s8 %v895
        %v897 = vlaneseq
        %v898 = vshrl.u32 %v897, 7
        %v899 = vsub.s32 %v896, %v898
        %v900 = vrot.slane %v886, %v899
        %v901 = vcombine.high %v893, 0
        %v902 = vcombine.high %v900, 0
        %v905 = vpack.i.b16 %v893, %v859
        %v907 = vshrl.u32 %v859, 16
        %v908 = vshrl.u32 %v893, 16
        %v909 = vpack.i.b16 %v908, %v907
        %v913 = vpack.i.b16 %v901, %v867
        %v915 = vshrl.u32 %v867, 16
        %v916 = vshrl.u32 %v901, 16
        %v917 = vpack.i.b16 %v916, %v915
        %v921 = vpack.i.b16 %v900, %v866
        %v923 = vshrl.u32 %v866, 16
        %v924 = vshrl.u32 %v900, 16
        %v925 = vpack.i.b16 %v924, %v923
        %v929 = vpack.i.b16 %v902, %v868
        %v931 = vshrl.u32 %v868, 16
        %v932 = vshrl.u32 %v902, 16
        %v933 = vpack.i.b16 %v932, %v931
        %v935 = vcombine.low %v905, %v921
        %v937 = vunpack.c.l.s4 1983009808
        %v938 = vunpack.c.0.s8 %v937
        %v939 = vlaneseq
        %v940 = vshrl.u32 %v939, 7
        %v941 = vsub.s32 %v938, %v940
        %v942 = vrot.slane %v935, %v941
        %v943 = vcombine.low %v913, %v929
        %v945 = vunpack.c.l.s4 1983009808
        %v946 = vunpack.c.0.s8 %v945
        %v947 = vlaneseq
        %v948 = vshrl.u32 %v947, 7
        %v949 = vsub.s32 %v946, %v948
        %v950 = vrot.slane %v943, %v949
        %v951 = vcombine.low %v942, %v950
        %v953 = vunpack.c.l.s4 1934713408
        %v954 = vunpack.c.0.s8 %v953
        %v955 = vlaneseq
        %v956 = vshrl.u32 %v955, 7
        %v957 = vsub.s32 %v954, %v956
        %v958 = vrot.slane %v951, %v957
        %v959 = vcombine.high %v958, 0
        %v960 = vcombine.low %v909, %v925
        %v962 = vunpack.c.l.s4 1983009808
        %v963 = vunpack.c.0.s8 %v962
        %v964 = vlaneseq
        %v965 = vshrl.u32 %v964, 7
        %v966 = vsub.s32 %v963, %v965
        %v967 = vrot.slane %v960, %v966
        %v968 = vcombine.low %v917, %v933
        %v970 = vunpack.c.l.s4 1983009808
        %v971 = vunpack.c.0.s8 %v970
        %v972 = vlaneseq
        %v973 = vshrl.u32 %v972, 7
        %v974 = vsub.s32 %v971, %v973
        %v975 = vrot.slane %v968, %v974
        %v976 = vcombine.low %v967, %v975
        %v978 = vunpack.c.l.s4 1934713408
        %v979 = vunpack.c.0.s8 %v978
        %v980 = vlaneseq
        %v981 = vshrl.u32 %v980, 7
        %v982 = vsub.s32 %v979, %v981
        %v983 = vrot.slane %v976, %v982
        %v984 = vcombine.high %v983, 0
        %v987 = vpack.i.b16 %v983, %v958
        %v988 = vshrl.u32 %v958, 16
        %v989 = vshrl.u32 %v983, 16
        %v990 = vpack.i.b16 %v989, %v988
        %v993 = vpack.i.b16 %v984, %v959
        %v994 = vshrl.u32 %v959, 16
        %v995 = vshrl.u32 %v984, 16
        %v996 = vpack.i.b16 %v995, %v994
        %v997 = vpack.c.bf16 %v654, %v654
        %999 = vrot.lane.b32.xlu0 %v997, 120
        %v1000 = vpop.permute.xlu0 %999
        %1001 = vrot.lane.b32.xlu0 %v997, 112
        %v1002 = vpop.permute.xlu0 %1001
        %1003 = vrot.lane.b32.xlu0 %v997, 104
        %v1004 = vpop.permute.xlu0 %1003
        %v1006 = vunpack.c.l.s4 1983009808
        %v1007 = vunpack.c.0.s8 %v1006
        %v1008 = vlaneseq
        %v1009 = vshrl.u32 %v1008, 7
        %v1010 = vsub.s32 %v1007, %v1009
        %v1011 = vrot.slane %v997, %v1010
        %v1014 = vunpack.c.l.s4 1983009808
        %v1015 = vunpack.c.0.s8 %v1014
        %v1016 = vlaneseq
        %v1017 = vshrl.u32 %v1016, 7
        %v1018 = vsub.s32 %v1015, %v1017
        %v1019 = vrot.slane %v1002, %v1018
        %v1020 = vcombine.low %v1011, %v1019
        %v1021 = vcombine.high %v1011, %v1019
        %v1023 = vunpack.c.l.s4 1934713408
        %v1024 = vunpack.c.0.s8 %v1023
        %v1025 = vlaneseq
        %v1026 = vshrl.u32 %v1025, 7
        %v1027 = vsub.s32 %v1024, %v1026
        %v1028 = vrot.slane %v1020, %v1027
        %v1030 = vunpack.c.l.s4 1934713408
        %v1031 = vunpack.c.0.s8 %v1030
        %v1032 = vlaneseq
        %v1033 = vshrl.u32 %v1032, 7
        %v1034 = vsub.s32 %v1031, %v1033
        %v1035 = vrot.slane %v1021, %v1034
        %v1036 = vcombine.high %v1028, 0
        %v1037 = vcombine.high %v1035, 0
        %v1040 = vunpack.c.l.s4 1983009808
        %v1041 = vunpack.c.0.s8 %v1040
        %v1042 = vlaneseq
        %v1043 = vshrl.u32 %v1042, 7
        %v1044 = vsub.s32 %v1041, %v1043
        %v1045 = vrot.slane %v1000, %v1044
        %v1048 = vunpack.c.l.s4 1983009808
        %v1049 = vunpack.c.0.s8 %v1048
        %v1050 = vlaneseq
        %v1051 = vshrl.u32 %v1050, 7
        %v1052 = vsub.s32 %v1049, %v1051
        %v1053 = vrot.slane %v1004, %v1052
        %v1054 = vcombine.low %v1045, %v1053
        %v1055 = vcombine.high %v1045, %v1053
        %v1057 = vunpack.c.l.s4 1934713408
        %v1058 = vunpack.c.0.s8 %v1057
        %v1059 = vlaneseq
        %v1060 = vshrl.u32 %v1059, 7
        %v1061 = vsub.s32 %v1058, %v1060
        %v1062 = vrot.slane %v1054, %v1061
        %v1064 = vunpack.c.l.s4 1934713408
        %v1065 = vunpack.c.0.s8 %v1064
        %v1066 = vlaneseq
        %v1067 = vshrl.u32 %v1066, 7
        %v1068 = vsub.s32 %v1065, %v1067
        %v1069 = vrot.slane %v1055, %v1068
        %v1070 = vcombine.high %v1062, 0
        %v1071 = vcombine.high %v1069, 0
        %v1074 = vpack.i.b16 %v1062, %v1028
        %v1076 = vshrl.u32 %v1028, 16
        %v1077 = vshrl.u32 %v1062, 16
        %v1078 = vpack.i.b16 %v1077, %v1076
        %v1082 = vpack.i.b16 %v1070, %v1036
        %v1084 = vshrl.u32 %v1036, 16
        %v1085 = vshrl.u32 %v1070, 16
        %v1086 = vpack.i.b16 %v1085, %v1084
        %v1090 = vpack.i.b16 %v1069, %v1035
        %v1092 = vshrl.u32 %v1035, 16
        %v1093 = vshrl.u32 %v1069, 16
        %v1094 = vpack.i.b16 %v1093, %v1092
        %v1098 = vpack.i.b16 %v1071, %v1037
        %v1100 = vshrl.u32 %v1037, 16
        %v1101 = vshrl.u32 %v1071, 16
        %v1102 = vpack.i.b16 %v1101, %v1100
        %v1104 = vcombine.low %v1074, %v1090
        %v1106 = vunpack.c.l.s4 1983009808
        %v1107 = vunpack.c.0.s8 %v1106
        %v1108 = vlaneseq
        %v1109 = vshrl.u32 %v1108, 7
        %v1110 = vsub.s32 %v1107, %v1109
        %v1111 = vrot.slane %v1104, %v1110
        %v1112 = vcombine.low %v1082, %v1098
        %v1114 = vunpack.c.l.s4 1983009808
        %v1115 = vunpack.c.0.s8 %v1114
        %v1116 = vlaneseq
        %v1117 = vshrl.u32 %v1116, 7
        %v1118 = vsub.s32 %v1115, %v1117
        %v1119 = vrot.slane %v1112, %v1118
        %v1120 = vcombine.low %v1111, %v1119
        %v1122 = vunpack.c.l.s4 1934713408
        %v1123 = vunpack.c.0.s8 %v1122
        %v1124 = vlaneseq
        %v1125 = vshrl.u32 %v1124, 7
        %v1126 = vsub.s32 %v1123, %v1125
        %v1127 = vrot.slane %v1120, %v1126
        %v1128 = vcombine.high %v1127, 0
        %v1129 = vcombine.low %v1078, %v1094
        %v1131 = vunpack.c.l.s4 1983009808
        %v1132 = vunpack.c.0.s8 %v1131
        %v1133 = vlaneseq
        %v1134 = vshrl.u32 %v1133, 7
        %v1135 = vsub.s32 %v1132, %v1134
        %v1136 = vrot.slane %v1129, %v1135
        %v1137 = vcombine.low %v1086, %v1102
        %v1139 = vunpack.c.l.s4 1983009808
        %v1140 = vunpack.c.0.s8 %v1139
        %v1141 = vlaneseq
        %v1142 = vshrl.u32 %v1141, 7
        %v1143 = vsub.s32 %v1140, %v1142
        %v1144 = vrot.slane %v1137, %v1143
        %v1145 = vcombine.low %v1136, %v1144
        %v1147 = vunpack.c.l.s4 1934713408
        %v1148 = vunpack.c.0.s8 %v1147
        %v1149 = vlaneseq
        %v1150 = vshrl.u32 %v1149, 7
        %v1151 = vsub.s32 %v1148, %v1150
        %v1152 = vrot.slane %v1145, %v1151
        %v1153 = vcombine.high %v1152, 0
        %v1156 = vpack.i.b16 %v1152, %v1127
        %v1157 = vshrl.u32 %v1127, 16
        %v1158 = vshrl.u32 %v1152, 16
        %v1159 = vpack.i.b16 %v1158, %v1157
        %v1162 = vpack.i.b16 %v1153, %v1128
        %v1163 = vshrl.u32 %v1128, 16
        %v1164 = vshrl.u32 %v1153, 16
        %v1165 = vpack.i.b16 %v1164, %v1163
        %vm1166 = vcmask 64512
        %v1168 = vsel %vm1166, %v818, 0
        %v1171 = vsel %vm1166, %v987, 0
        %1173 = vmatprep.subr.bf16.mxu0 0
        %1174 = vmatpush1.bf16.xpose.msra.mxu0 %v1171
        %1175 = vmatprep.subr.bf16.mxu0 0
        %1176 = vmatpush1.bf16.xpose.msra.mxu0 0
        %1177 = vmatprep.subr.bf16.mxu0 0
        %1178 = vmatpush1.bf16.xpose.msra.mxu0 0
        %1179 = vmatprep.subr.bf16.mxu0 0
        %1180 = vmatpush1.bf16.xpose.msra.mxu0 0
        %1181 = vmatprep.subr.bf16.mxu0 0
        %1182 = vmatpush1.bf16.xpose.msra.mxu0 0
        %1183 = vmatprep.subr.bf16.mxu0 0
        %1184 = vmatpush1.bf16.xpose.msra.mxu0 0
        %1185 = vmatprep.subr.bf16.mxu0 0
        %1186 = vmatpush1.bf16.xpose.msra.mxu0 0
        %1187 = vmatprep.subr.bf16.mxu0 0
        %1188 = vmatpush1.bf16.xpose.msra.mxu0 0
        %1189 = vmatprep.subr.bf16.mxu0 0
        %1190 = vmatpush1.bf16.xpose.msra.mxu0 0
        %1191 = vmatprep.subr.bf16.mxu0 0
        %1192 = vmatpush1.bf16.xpose.msra.mxu0 0
        %1193 = vmatprep.subr.bf16.mxu0 0
        %1194 = vmatpush1.bf16.xpose.msra.mxu0 0
        %1195 = vmatprep.subr.bf16.mxu0 0
        %1196 = vmatpush1.bf16.xpose.msra.mxu0 0
        %1197 = vmatprep.subr.bf16.mxu0 0
        %1198 = vmatpush1.bf16.xpose.msra.mxu0 0
        %1199 = vmatprep.subr.bf16.mxu0 0
        %1200 = vmatpush1.bf16.xpose.msra.mxu0 0
        %1201 = vmatprep.subr.bf16.mxu0 0
        %1202 = vmatpush1.bf16.xpose.msra.mxu0 0
        %1203 = vmatprep.subr.bf16.mxu0 0
        %1204 = vmatpush1.bf16.xpose.msra.mxu0 0
        %1205 = vmatprep.mubr.bf16.mxu0 0
        %1206 = vmatmul.mubr.bf16.gmra.mrb[0].mxu0 %v1168
        %v1207 = vpop.f32.mrb[0].mxu0
        %v1208 = vadd.f32 0.0, %v1207
        %v1209 = vpop.f32.mrb[0].mxu0
        %v1210 = vpop.f32.mrb[0].mxu0
        %v1211 = vpop.f32.mrb[0].mxu0
        %1212 = vdwg.mxu0
        %v1214 = vsel %vm1166, %v821, 0
        %v1217 = vsel %vm1166, %v990, 0
        %1219 = vmatprep.subr.bf16.mxu0 0
        %1220 = vmatpush1.bf16.xpose.msra.mxu0 %v1217
        %1221 = vmatprep.subr.bf16.mxu0 0
        %1222 = vmatpush1.bf16.xpose.msra.mxu0 0
        %1223 = vmatprep.subr.bf16.mxu0 0
        %1224 = vmatpush1.bf16.xpose.msra.mxu0 0
        %1225 = vmatprep.subr.bf16.mxu0 0
        %1226 = vmatpush1.bf16.xpose.msra.mxu0 0
        %1227 = vmatprep.subr.bf16.mxu0 0
        %1228 = vmatpush1.bf16.xpose.msra.mxu0 0
        %1229 = vmatprep.subr.bf16.mxu0 0
        %1230 = vmatpush1.bf16.xpose.msra.mxu0 0
        %1231 = vmatprep.subr.bf16.mxu0 0
        %1232 = vmatpush1.bf16.xpose.msra.mxu0 0
        %1233 = vmatprep.subr.bf16.mxu0 0
        %1234 = vmatpush1.bf16.xpose.msra.mxu0 0
        %1235 = vmatprep.subr.bf16.mxu0 0
        %1236 = vmatpush1.bf16.xpose.msra.mxu0 0
        %1237 = vmatprep.subr.bf16.mxu0 0
        %1238 = vmatpush1.bf16.xpose.msra.mxu0 0
        %1239 = vmatprep.subr.bf16.mxu0 0
        %1240 = vmatpush1.bf16.xpose.msra.mxu0 0
        %1241 = vmatprep.subr.bf16.mxu0 0
        %1242 = vmatpush1.bf16.xpose.msra.mxu0 0
        %1243 = vmatprep.subr.bf16.mxu0 0
        %1244 = vmatpush1.bf16.xpose.msra.mxu0 0
        %1245 = vmatprep.subr.bf16.mxu0 0
        %1246 = vmatpush1.bf16.xpose.msra.mxu0 0
        %1247 = vmatprep.subr.bf16.mxu0 0
        %1248 = vmatpush1.bf16.xpose.msra.mxu0 0
        %1249 = vmatprep.subr.bf16.mxu0 0
        %1250 = vmatpush1.bf16.xpose.msra.mxu0 0
        %1251 = vmatprep.mubr.bf16.mxu0 0
        %1252 = vmatmul.mubr.bf16.gmra.mrb[0].mxu0 %v1214
        %v1253 = vpop.f32.mrb[0].mxu0
        %v1254 = vadd.f32 0.0, %v1253
        %v1255 = vpop.f32.mrb[0].mxu0
        %v1256 = vpop.f32.mrb[0].mxu0
        %v1257 = vpop.f32.mrb[0].mxu0
        %1258 = vdwg.mxu0
        %v1260 = vsel %vm1166, %v824, 0
        %v1263 = vsel %vm1166, %v993, 0
        %1265 = vmatprep.subr.bf16.mxu0 0
        %1266 = vmatpush1.bf16.xpose.msra.mxu0 %v1263
        %1267 = vmatprep.subr.bf16.mxu0 0
        %1268 = vmatpush1.bf16.xpose.msra.mxu0 0
        %1269 = vmatprep.subr.bf16.mxu0 0
        %1270 = vmatpush1.bf16.xpose.msra.mxu0 0
        %1271 = vmatprep.subr.bf16.mxu0 0
        %1272 = vmatpush1.bf16.xpose.msra.mxu0 0
        %1273 = vmatprep.subr.bf16.mxu0 0
        %1274 = vmatpush1.bf16.xpose.msra.mxu0 0
        %1275 = vmatprep.subr.bf16.mxu0 0
        %1276 = vmatpush1.bf16.xpose.msra.mxu0 0
        %1277 = vmatprep.subr.bf16.mxu0 0
        %1278 = vmatpush1.bf16.xpose.msra.mxu0 0
        %1279 = vmatprep.subr.bf16.mxu0 0
        %1280 = vmatpush1.bf16.xpose.msra.mxu0 0
        %1281 = vmatprep.subr.bf16.mxu0 0
        %1282 = vmatpush1.bf16.xpose.msra.mxu0 0
        %1283 = vmatprep.subr.bf16.mxu0 0
        %1284 = vmatpush1.bf16.xpose.msra.mxu0 0
        %1285 = vmatprep.subr.bf16.mxu0 0
        %1286 = vmatpush1.bf16.xpose.msra.mxu0 0
        %1287 = vmatprep.subr.bf16.mxu0 0
        %1288 = vmatpush1.bf16.xpose.msra.mxu0 0
        %1289 = vmatprep.subr.bf16.mxu0 0
        %1290 = vmatpush1.bf16.xpose.msra.mxu0 0
        %1291 = vmatprep.subr.bf16.mxu0 0
        %1292 = vmatpush1.bf16.xpose.msra.mxu0 0
        %1293 = vmatprep.subr.bf16.mxu0 0
        %1294 = vmatpush1.bf16.xpose.msra.mxu0 0
        %1295 = vmatprep.subr.bf16.mxu0 0
        %1296 = vmatpush1.bf16.xpose.msra.mxu0 0
        %1297 = vmatprep.mubr.bf16.mxu0 0
        %1298 = vmatmul.mubr.bf16.gmra.mrb[0].mxu0 %v1260
        %v1299 = vpop.f32.mrb[0].mxu0
        %v1300 = vadd.f32 0.0, %v1299
        %v1301 = vpop.f32.mrb[0].mxu0
        %v1302 = vpop.f32.mrb[0].mxu0
        %v1303 = vpop.f32.mrb[0].mxu0
        %1304 = vdwg.mxu0
        %v1306 = vsel %vm1166, %v827, 0
        %v1309 = vsel %vm1166, %v996, 0
        %1311 = vmatprep.subr.bf16.mxu0 0
        %1312 = vmatpush1.bf16.xpose.msra.mxu0 %v1309
        %1313 = vmatprep.subr.bf16.mxu0 0
        %1314 = vmatpush1.bf16.xpose.msra.mxu0 0
        %1315 = vmatprep.subr.bf16.mxu0 0
        %1316 = vmatpush1.bf16.xpose.msra.mxu0 0
        %1317 = vmatprep.subr.bf16.mxu0 0
        %1318 = vmatpush1.bf16.xpose.msra.mxu0 0
        %1319 = vmatprep.subr.bf16.mxu0 0
        %1320 = vmatpush1.bf16.xpose.msra.mxu0 0
        %1321 = vmatprep.subr.bf16.mxu0 0
        %1322 = vmatpush1.bf16.xpose.msra.mxu0 0
        %1323 = vmatprep.subr.bf16.mxu0 0
        %1324 = vmatpush1.bf16.xpose.msra.mxu0 0
        %1325 = vmatprep.subr.bf16.mxu0 0
        %1326 = vmatpush1.bf16.xpose.msra.mxu0 0
        %1327 = vmatprep.subr.bf16.mxu0 0
        %1328 = vmatpush1.bf16.xpose.msra.mxu0 0
        %1329 = vmatprep.subr.bf16.mxu0 0
        %1330 = vmatpush1.bf16.xpose.msra.mxu0 0
        %1331 = vmatprep.subr.bf16.mxu0 0
        %1332 = vmatpush1.bf16.xpose.msra.mxu0 0
        %1333 = vmatprep.subr.bf16.mxu0 0
        %1334 = vmatpush1.bf16.xpose.msra.mxu0 0
        %1335 = vmatprep.subr.bf16.mxu0 0
        %1336 = vmatpush1.bf16.xpose.msra.mxu0 0
        %1337 = vmatprep.subr.bf16.mxu0 0
        %1338 = vmatpush1.bf16.xpose.msra.mxu0 0
        %1339 = vmatprep.subr.bf16.mxu0 0
        %1340 = vmatpush1.bf16.xpose.msra.mxu0 0
        %1341 = vmatprep.subr.bf16.mxu0 0
        %1342 = vmatpush1.bf16.xpose.msra.mxu0 0
        %1343 = vmatprep.mubr.bf16.mxu0 0
        %1344 = vmatmul.mubr.bf16.gmra.mrb[0].mxu0 %v1306
        %v1345 = vpop.f32.mrb[0].mxu0
        %v1346 = vadd.f32 0.0, %v1345
        %v1347 = vpop.f32.mrb[0].mxu0
        %v1348 = vpop.f32.mrb[0].mxu0
        %v1349 = vpop.f32.mrb[0].mxu0
        %1350 = vdwg.mxu0
        %v1351 = vmul.f32 %v1208, 0.35355338
        %v1352 = vmul.f32 %v1254, 0.35355338
        %v1353 = vmul.f32 %v1300, 0.35355338
        %v1354 = vmul.f32 %v1346, 0.35355338
        %v1355 = vsel %vm1166, %v1351, -inf
        %1356 = vmax.xlane.f32.xlu0 %v1355
        %v1357 = vpop.xlane.xlu0 %1356
        %v1358 = vsel %vm1166, %v1352, -inf
        %1359 = vmax.xlane.f32.xlu0 %v1358
        %v1360 = vpop.xlane.xlu0 %1359
        %v1361 = vsel %vm1166, %v1353, -inf
        %1362 = vmax.xlane.f32.xlu0 %v1361
        %v1363 = vpop.xlane.xlu0 %1362
        %v1364 = vsel %vm1166, %v1354, -inf
        %1365 = vmax.xlane.f32.xlu0 %v1364
        %v1366 = vpop.xlane.xlu0 %1365
        %v1367 = vsub.f32 %v1351, %v1357
        %v1368 = vsub.f32 %v1352, %v1360
        %v1369 = vsub.f32 %v1353, %v1363
        %v1370 = vsub.f32 %v1354, %v1366
        %v1371 = vmul.f32 %v1367, 1.442695
        %v1372 = vpow.pop %v1371
        %v1373 = vmul.f32 %v1368, 1.442695
        %v1374 = vpow.pop %v1373
        %v1375 = vmul.f32 %v1369, 1.442695
        %v1376 = vpow.pop %v1375
        %v1377 = vmul.f32 %v1370, 1.442695
        %v1378 = vpow.pop %v1377
        %v1379 = vsel %vm1166, %v1372, 0.0
        %1380 = vadd.xlane.f32.xlu0 %v1379
        %v1381 = vpop.xlane.xlu0 %1380
        %v1382 = vsel %vm1166, %v1374, 0.0
        %1383 = vadd.xlane.f32.xlu0 %v1382
        %v1384 = vpop.xlane.xlu0 %1383
        %v1385 = vsel %vm1166, %v1376, 0.0
        %1386 = vadd.xlane.f32.xlu0 %v1385
        %v1387 = vpop.xlane.xlu0 %1386
        %v1388 = vsel %vm1166, %v1378, 0.0
        %1389 = vadd.xlane.f32.xlu0 %v1388
        %v1390 = vpop.xlane.xlu0 %1389
        %v1391 = vrcp.pop %v1381
        %v1392 = vmul.f32 %v1372, %v1391
        %v1393 = vrcp.pop %v1384
        %v1394 = vmul.f32 %v1374, %v1393
        %v1395 = vrcp.pop %v1387
        %v1396 = vmul.f32 %v1376, %v1395
        %v1397 = vrcp.pop %v1390
        %v1398 = vmul.f32 %v1378, %v1397
        %v1399 = vpack.c.bf16 %v1392, %v1392
        %v1400 = vpack.c.bf16 %v1394, %v1394
        %v1401 = vpack.c.bf16 %v1396, %v1396
        %v1402 = vpack.c.bf16 %v1398, %v1398
        %v1404 = vsel %vm1166, %v1399, 0
        %vm1406 = vcmask 1043456
        %v1408 = vsel %vm1406, %v1156, 0
        %1410 = vmatprep.subr.bf16.mxu0 0
        %1411 = vmatpush1.bf16.msra.mxu0 %v1408
        %1412 = vmatprep.subr.bf16.mxu0 0
        %1413 = vmatpush1.bf16.msra.mxu0 0
        %1414 = vmatprep.subr.bf16.mxu0 0
        %1415 = vmatpush1.bf16.msra.mxu0 0
        %1416 = vmatprep.subr.bf16.mxu0 0
        %1417 = vmatpush1.bf16.msra.mxu0 0
        %1418 = vmatprep.subr.bf16.mxu0 0
        %1419 = vmatpush1.bf16.msra.mxu0 0
        %1420 = vmatprep.subr.bf16.mxu0 0
        %1421 = vmatpush1.bf16.msra.mxu0 0
        %1422 = vmatprep.subr.bf16.mxu0 0
        %1423 = vmatpush1.bf16.msra.mxu0 0
        %1424 = vmatprep.subr.bf16.mxu0 0
        %1425 = vmatpush1.bf16.msra.mxu0 0
        %1426 = vmatprep.subr.bf16.mxu0 0
        %1427 = vmatpush1.bf16.msra.mxu0 0
        %1428 = vmatprep.subr.bf16.mxu0 0
        %1429 = vmatpush1.bf16.msra.mxu0 0
        %1430 = vmatprep.subr.bf16.mxu0 0
        %1431 = vmatpush1.bf16.msra.mxu0 0
        %1432 = vmatprep.subr.bf16.mxu0 0
        %1433 = vmatpush1.bf16.msra.mxu0 0
        %1434 = vmatprep.subr.bf16.mxu0 0
        %1435 = vmatpush1.bf16.msra.mxu0 0
        %1436 = vmatprep.subr.bf16.mxu0 0
        %1437 = vmatpush1.bf16.msra.mxu0 0
        %1438 = vmatprep.subr.bf16.mxu0 0
        %1439 = vmatpush1.bf16.msra.mxu0 0
        %1440 = vmatprep.subr.bf16.mxu0 0
        %1441 = vmatpush1.bf16.msra.mxu0 0
        %1442 = vmatprep.mubr.bf16.mxu0 0
        %1443 = vmatmul.mubr.bf16.gmra.mrb[0].mxu0 %v1404
        %v1444 = vpop.f32.mrb[0].mxu0
        %v1445 = vadd.f32 0.0, %v1444
        %v1446 = vpop.f32.mrb[0].mxu0
        %v1447 = vpop.f32.mrb[0].mxu0
        %v1448 = vpop.f32.mrb[0].mxu0
        %1449 = vdwg.mxu0
        %v1451 = vsel %vm1166, %v1400, 0
        %v1454 = vsel %vm1406, %v1159, 0
        %1456 = vmatprep.subr.bf16.mxu0 0
        %1457 = vmatpush1.bf16.msra.mxu0 %v1454
        %1458 = vmatprep.subr.bf16.mxu0 0
        %1459 = vmatpush1.bf16.msra.mxu0 0
        %1460 = vmatprep.subr.bf16.mxu0 0
        %1461 = vmatpush1.bf16.msra.mxu0 0
        %1462 = vmatprep.subr.bf16.mxu0 0
        %1463 = vmatpush1.bf16.msra.mxu0 0
        %1464 = vmatprep.subr.bf16.mxu0 0
        %1465 = vmatpush1.bf16.msra.mxu0 0
        %1466 = vmatprep.subr.bf16.mxu0 0
        %1467 = vmatpush1.bf16.msra.mxu0 0
        %1468 = vmatprep.subr.bf16.mxu0 0
        %1469 = vmatpush1.bf16.msra.mxu0 0
        %1470 = vmatprep.subr.bf16.mxu0 0
        %1471 = vmatpush1.bf16.msra.mxu0 0
        %1472 = vmatprep.subr.bf16.mxu0 0
        %1473 = vmatpush1.bf16.msra.mxu0 0
        %1474 = vmatprep.subr.bf16.mxu0 0
        %1475 = vmatpush1.bf16.msra.mxu0 0
        %1476 = vmatprep.subr.bf16.mxu0 0
        %1477 = vmatpush1.bf16.msra.mxu0 0
        %1478 = vmatprep.subr.bf16.mxu0 0
        %1479 = vmatpush1.bf16.msra.mxu0 0
        %1480 = vmatprep.subr.bf16.mxu0 0
        %1481 = vmatpush1.bf16.msra.mxu0 0
        %1482 = vmatprep.subr.bf16.mxu0 0
        %1483 = vmatpush1.bf16.msra.mxu0 0
        %1484 = vmatprep.subr.bf16.mxu0 0
        %1485 = vmatpush1.bf16.msra.mxu0 0
        %1486 = vmatprep.subr.bf16.mxu0 0
        %1487 = vmatpush1.bf16.msra.mxu0 0
        %1488 = vmatprep.mubr.bf16.mxu0 0
        %1489 = vmatmul.mubr.bf16.gmra.mrb[0].mxu0 %v1451
        %v1490 = vpop.f32.mrb[0].mxu0
        %v1491 = vadd.f32 0.0, %v1490
        %v1492 = vpop.f32.mrb[0].mxu0
        %v1493 = vpop.f32.mrb[0].mxu0
        %v1494 = vpop.f32.mrb[0].mxu0
        %1495 = vdwg.mxu0
        %v1497 = vsel %vm1166, %v1401, 0
        %v1500 = vsel %vm1406, %v1162, 0
        %1502 = vmatprep.subr.bf16.mxu0 0
        %1503 = vmatpush1.bf16.msra.mxu0 %v1500
        %1504 = vmatprep.subr.bf16.mxu0 0
        %1505 = vmatpush1.bf16.msra.mxu0 0
        %1506 = vmatprep.subr.bf16.mxu0 0
        %1507 = vmatpush1.bf16.msra.mxu0 0
        %1508 = vmatprep.subr.bf16.mxu0 0
        %1509 = vmatpush1.bf16.msra.mxu0 0
        %1510 = vmatprep.subr.bf16.mxu0 0
        %1511 = vmatpush1.bf16.msra.mxu0 0
        %1512 = vmatprep.subr.bf16.mxu0 0
        %1513 = vmatpush1.bf16.msra.mxu0 0
        %1514 = vmatprep.subr.bf16.mxu0 0
        %1515 = vmatpush1.bf16.msra.mxu0 0
        %1516 = vmatprep.subr.bf16.mxu0 0
        %1517 = vmatpush1.bf16.msra.mxu0 0
        %1518 = vmatprep.subr.bf16.mxu0 0
        %1519 = vmatpush1.bf16.msra.mxu0 0
        %1520 = vmatprep.subr.bf16.mxu0 0
        %1521 = vmatpush1.bf16.msra.mxu0 0
        %1522 = vmatprep.subr.bf16.mxu0 0
        %1523 = vmatpush1.bf16.msra.mxu0 0
        %1524 = vmatprep.subr.bf16.mxu0 0
        %1525 = vmatpush1.bf16.msra.mxu0 0
        %1526 = vmatprep.subr.bf16.mxu0 0
        %1527 = vmatpush1.bf16.msra.mxu0 0
        %1528 = vmatprep.subr.bf16.mxu0 0
        %1529 = vmatpush1.bf16.msra.mxu0 0
        %1530 = vmatprep.subr.bf16.mxu0 0
        %1531 = vmatpush1.bf16.msra.mxu0 0
        %1532 = vmatprep.subr.bf16.mxu0 0
        %1533 = vmatpush1.bf16.msra.mxu0 0
        %1534 = vmatprep.mubr.bf16.mxu0 0
        %1535 = vmatmul.mubr.bf16.gmra.mrb[0].mxu0 %v1497
        %v1536 = vpop.f32.mrb[0].mxu0
        %v1537 = vadd.f32 0.0, %v1536
        %v1538 = vpop.f32.mrb[0].mxu0
        %v1539 = vpop.f32.mrb[0].mxu0
        %v1540 = vpop.f32.mrb[0].mxu0
        %1541 = vdwg.mxu0
        %v1543 = vsel %vm1166, %v1402, 0
        %v1546 = vsel %vm1406, %v1165, 0
        %1548 = vmatprep.subr.bf16.mxu0 0
        %1549 = vmatpush1.bf16.msra.mxu0 %v1546
        %1550 = vmatprep.subr.bf16.mxu0 0
        %1551 = vmatpush1.bf16.msra.mxu0 0
        %1552 = vmatprep.subr.bf16.mxu0 0
        %1553 = vmatpush1.bf16.msra.mxu0 0
        %1554 = vmatprep.subr.bf16.mxu0 0
        %1555 = vmatpush1.bf16.msra.mxu0 0
        %1556 = vmatprep.subr.bf16.mxu0 0
        %1557 = vmatpush1.bf16.msra.mxu0 0
        %1558 = vmatprep.subr.bf16.mxu0 0
        %1559 = vmatpush1.bf16.msra.mxu0 0
        %1560 = vmatprep.subr.bf16.mxu0 0
        %1561 = vmatpush1.bf16.msra.mxu0 0
        %1562 = vmatprep.subr.bf16.mxu0 0
        %1563 = vmatpush1.bf16.msra.mxu0 0
        %1564 = vmatprep.subr.bf16.mxu0 0
        %1565 = vmatpush1.bf16.msra.mxu0 0
        %1566 = vmatprep.subr.bf16.mxu0 0
        %1567 = vmatpush1.bf16.msra.mxu0 0
        %1568 = vmatprep.subr.bf16.mxu0 0
        %1569 = vmatpush1.bf16.msra.mxu0 0
        %1570 = vmatprep.subr.bf16.mxu0 0
        %1571 = vmatpush1.bf16.msra.mxu0 0
        %1572 = vmatprep.subr.bf16.mxu0 0
        %1573 = vmatpush1.bf16.msra.mxu0 0
        %1574 = vmatprep.subr.bf16.mxu0 0
        %1575 = vmatpush1.bf16.msra.mxu0 0
        %1576 = vmatprep.subr.bf16.mxu0 0
        %1577 = vmatpush1.bf16.msra.mxu0 0
        %1578 = vmatprep.subr.bf16.mxu0 0
        %1579 = vmatpush1.bf16.msra.mxu0 0
        %1580 = vmatprep.mubr.bf16.mxu0 0
        %1581 = vmatmul.mubr.bf16.gmra.mrb[0].mxu0 %v1543
        %v1582 = vpop.f32.mrb[0].mxu0
        %v1583 = vadd.f32 0.0, %v1582
        %v1584 = vpop.f32.mrb[0].mxu0
        %v1585 = vpop.f32.mrb[0].mxu0
        %v1586 = vpop.f32.mrb[0].mxu0
        %1587 = vdwg.mxu0
        %v1588 = vcombine.low %v1445, %v1537
        %v1589 = vcombine.high %v1445, %v1537
        %v1591 = vunpack.c.l.s4 1983009808
        %v1592 = vunpack.c.0.s8 %v1591
        %v1593 = vlaneseq
        %v1594 = vshrl.u32 %v1593, 7
        %v1595 = vsub.s32 %v1592, %v1594
        %v1596 = vrot.slane %v1588, %v1595
        %v1598 = vunpack.c.l.s4 1983009808
        %v1599 = vunpack.c.0.s8 %v1598
        %v1600 = vlaneseq
        %v1601 = vshrl.u32 %v1600, 7
        %v1602 = vsub.s32 %v1599, %v1601
        %v1603 = vrot.slane %v1589, %v1602
        %v1604 = vcombine.low %v1491, %v1583
        %v1605 = vcombine.high %v1491, %v1583
        %v1607 = vunpack.c.l.s4 1983009808
        %v1608 = vunpack.c.0.s8 %v1607
        %v1609 = vlaneseq
        %v1610 = vshrl.u32 %v1609, 7
        %v1611 = vsub.s32 %v1608, %v1610
        %v1612 = vrot.slane %v1604, %v1611
        %v1614 = vunpack.c.l.s4 1983009808
        %v1615 = vunpack.c.0.s8 %v1614
        %v1616 = vlaneseq
        %v1617 = vshrl.u32 %v1616, 7
        %v1618 = vsub.s32 %v1615, %v1617
        %v1619 = vrot.slane %v1605, %v1618
        %v1620 = vcombine.low %v1596, %v1612
        %v1621 = vcombine.high %v1596, %v1612
        %v1623 = vunpack.c.l.s4 1934713408
        %v1624 = vunpack.c.0.s8 %v1623
        %v1625 = vlaneseq
        %v1626 = vshrl.u32 %v1625, 7
        %v1627 = vsub.s32 %v1624, %v1626
        %v1628 = vrot.slane %v1620, %v1627
        %v1630 = vunpack.c.l.s4 1934713408
        %v1631 = vunpack.c.0.s8 %v1630
        %v1632 = vlaneseq
        %v1633 = vshrl.u32 %v1632, 7
        %v1634 = vsub.s32 %v1631, %v1633
        %v1635 = vrot.slane %v1621, %v1634
        %v1636 = vcombine.low %v1603, %v1619
        %v1637 = vcombine.high %v1603, %v1619
        %v1639 = vunpack.c.l.s4 1934713408
        %v1640 = vunpack.c.0.s8 %v1639
        %v1641 = vlaneseq
        %v1642 = vshrl.u32 %v1641, 7
        %v1643 = vsub.s32 %v1640, %v1642
        %v1644 = vrot.slane %v1636, %v1643
        %v1646 = vunpack.c.l.s4 1934713408
        %v1647 = vunpack.c.0.s8 %v1646
        %v1648 = vlaneseq
        %v1649 = vshrl.u32 %v1648, 7
        %v1650 = vsub.s32 %v1647, %v1649
        %v1651 = vrot.slane %v1637, %v1650
        %v1652 = vcombine.high %v1628, 0.0
        %v1653 = vcombine.high %v1635, 0.0
        %v1654 = vcombine.high %v1644, 0.0
        %v1655 = vcombine.high %v1651, 0.0
        %v1656 = vcombine.low %v1628, %v1635
        %v1658 = vunpack.c.l.s4 1983009808
        %v1659 = vunpack.c.0.s8 %v1658
        %v1660 = vlaneseq
        %v1661 = vshrl.u32 %v1660, 7
        %v1662 = vsub.s32 %v1659, %v1661
        %v1663 = vrot.slane %v1656, %v1662
        %v1664 = vcombine.low %v1652, %v1653
        %v1666 = vunpack.c.l.s4 1983009808
        %v1667 = vunpack.c.0.s8 %v1666
        %v1668 = vlaneseq
        %v1669 = vshrl.u32 %v1668, 7
        %v1670 = vsub.s32 %v1667, %v1669
        %v1671 = vrot.slane %v1664, %v1670
        %v1672 = vcombine.low %v1644, %v1651
        %v1674 = vunpack.c.l.s4 1983009808
        %v1675 = vunpack.c.0.s8 %v1674
        %v1676 = vlaneseq
        %v1677 = vshrl.u32 %v1676, 7
        %v1678 = vsub.s32 %v1675, %v1677
        %v1679 = vrot.slane %v1672, %v1678
        %v1680 = vcombine.low %v1654, %v1655
        %v1682 = vunpack.c.l.s4 1983009808
        %v1683 = vunpack.c.0.s8 %v1682
        %v1684 = vlaneseq
        %v1685 = vshrl.u32 %v1684, 7
        %v1686 = vsub.s32 %v1683, %v1685
        %v1687 = vrot.slane %v1680, %v1686
        %v1688 = vcombine.low %v1663, %v1671
        %v1689 = vcombine.high %v1663, %v1671
        %v1691 = vunpack.c.l.s4 1934713408
        %v1692 = vunpack.c.0.s8 %v1691
        %v1693 = vlaneseq
        %v1694 = vshrl.u32 %v1693, 7
        %v1695 = vsub.s32 %v1692, %v1694
        %v1696 = vrot.slane %v1688, %v1695
        %v1698 = vunpack.c.l.s4 1934713408
        %v1699 = vunpack.c.0.s8 %v1698
        %v1700 = vlaneseq
        %v1701 = vshrl.u32 %v1700, 7
        %v1702 = vsub.s32 %v1699, %v1701
        %v1703 = vrot.slane %v1689, %v1702
        %v1704 = vcombine.low %v1679, %v1687
        %v1705 = vcombine.high %v1679, %v1687
        %v1707 = vunpack.c.l.s4 1934713408
        %v1708 = vunpack.c.0.s8 %v1707
        %v1709 = vlaneseq
        %v1710 = vshrl.u32 %v1709, 7
        %v1711 = vsub.s32 %v1708, %v1710
        %v1712 = vrot.slane %v1704, %v1711
        %v1714 = vunpack.c.l.s4 1934713408
        %v1715 = vunpack.c.0.s8 %v1714
        %v1716 = vlaneseq
        %v1717 = vshrl.u32 %v1716, 7
        %v1718 = vsub.s32 %v1715, %v1717
        %v1719 = vrot.slane %v1705, %v1718
        %v1720 = vcombine.low %v1696, %v1712
        %v1721 = vcombine.high %v1696, %v1712
        %v1722 = vcombine.low %v1703, %v1719
        %v1723 = vcombine.high %v1703, %v1719
        %1725 = vrot.lane.b32.xlu0 %v1721, 8
        %v1726 = vpop.permute.xlu0 %1725
        %1729 = vrot.lane.b32.xlu0 %v1722, 16
        %v1730 = vpop.permute.xlu0 %1729
        %1733 = vrot.lane.b32.xlu0 %v1723, 24
        %v1734 = vpop.permute.xlu0 %1733
        %v1736 = vsel %vm1166, %v1720, %v1726
        %vm1737 = vcmask 130048
        %v1738 = vsel %vm1737, %v1736, %v1730
        %vm1739 = vcmask 195584
        %v1740 = vsel %vm1739, %v1738, %v1734
        %v1741 = vpack.c.bf16 %v1740, %v1740
        %v1742 = vld [vmem:[#allocation8] sm:$0xf]
        %v1743 = vld [vmem:[#allocation8 + $0x4] sm:$0xf]
        %v1744 = vld [vmem:[#allocation8 + $0x8] sm:$0xf]
        %v1745 = vld [vmem:[#allocation8 + $0xc] sm:$0xf]
        %v1746 = vld [vmem:[%s8] sm:$0x1]
        %v1748 = vlaneseq
        %v1749 = vshrl.u32 %v1748, 7
        %v1750 = vsub.s32 0, %v1749
        %v1751 = vrot.slane %v1746, %v1750
        %v1757 = vunpack.c.l.b16 %v1742
        %v1758 = vunpack.c.l.b16 %v1743
        %v1759 = vunpack.c.l.b16 %v1744
        %v1760 = vunpack.c.l.b16 %v1745
        %v1761 = vpack.c.b16 %v1758, %v1757
        %v1762 = vpack.c.b16 %v1760, %v1759
        %v1766 = vsel %vm489, %v1741, 0
        %1768 = vmatprep.subr.bf16.mxu0 0
        %1769 = vmatpush1.bf16.msra.mxu0 %v1761
        %1770 = vmatprep.subr.bf16.mxu0 0
        %1771 = vmatpush1.bf16.msra.mxu0 %v1762
        %1772 = vmatprep.subr.bf16.mxu0 0
        %1773 = vmatpush1.bf16.msra.mxu0 0
        %1774 = vmatprep.subr.bf16.mxu0 0
        %1775 = vmatpush1.bf16.msra.mxu0 0
        %1776 = vmatprep.subr.bf16.mxu0 0
        %1777 = vmatpush1.bf16.msra.mxu0 0
        %1778 = vmatprep.subr.bf16.mxu0 0
        %1779 = vmatpush1.bf16.msra.mxu0 0
        %1780 = vmatprep.subr.bf16.mxu0 0
        %1781 = vmatpush1.bf16.msra.mxu0 0
        %1782 = vmatprep.subr.bf16.mxu0 0
        %1783 = vmatpush1.bf16.msra.mxu0 0
        %1784 = vmatprep.subr.bf16.mxu0 0
        %1785 = vmatpush1.bf16.msra.mxu0 0
        %1786 = vmatprep.subr.bf16.mxu0 0
        %1787 = vmatpush1.bf16.msra.mxu0 0
        %1788 = vmatprep.subr.bf16.mxu0 0
        %1789 = vmatpush1.bf16.msra.mxu0 0
        %1790 = vmatprep.subr.bf16.mxu0 0
        %1791 = vmatpush1.bf16.msra.mxu0 0
        %1792 = vmatprep.subr.bf16.mxu0 0
        %1793 = vmatpush1.bf16.msra.mxu0 0
        %1794 = vmatprep.subr.bf16.mxu0 0
        %1795 = vmatpush1.bf16.msra.mxu0 0
        %1796 = vmatprep.subr.bf16.mxu0 0
        %1797 = vmatpush1.bf16.msra.mxu0 0
        %1798 = vmatprep.subr.bf16.mxu0 0
        %1799 = vmatpush1.bf16.msra.mxu0 0
        %1800 = vmatprep.mubr.bf16.mxu0 0
        %1801 = vmatmul.mubr.bf16.gmra.mrb[0].mxu0 %v1766
        %v1802 = vpop.f32.mrb[0].mxu0
        %v1803 = vadd.f32 %v1751, %v1802
        %v1804 = vpop.f32.mrb[0].mxu0
        %v1805 = vpop.f32.mrb[0].mxu0
        %v1806 = vpop.f32.mrb[0].mxu0
        %1807 = vdwg.mxu0
        %v1808 = vsel %vm489, %v1803, 0.0
        %1809 = vadd.xlane.f32.xlu0 %v1808
        %v1810 = vpop.xlane.xlu0 %1809
        %v1811 = vrcp.pop 32.0
        %v1812 = vmul.f32 %v1810, %v1811
        %v1813 = vsub.f32 %v1803, %v1812
        %v1814 = vmul.f32 %v1813, %v1813
        %v1815 = vsel %vm489, %v1814, 0.0
        %1816 = vadd.xlane.f32.xlu0 %v1815
        %v1817 = vpop.xlane.xlu0 %1816
        %v1818 = vmul.f32 %v1817, %v1811
        %v1819 = vadd.f32 %v1818, 1e-05
        %v1820 = vrsqrt.pop %v1819
        %v1821 = vmul.f32 %v1813, %v1820
        %v1822 = vld [vmem:[%s9] sm:$0x1]
        %v1824 = vlaneseq
        %v1825 = vshrl.u32 %v1824, 7
        %v1826 = vsub.s32 0, %v1825
        %v1827 = vrot.slane %v1822, %v1826
        %v1829 = vmul.f32 %v1821, %v1827
        %v1830 = vld [vmem:[%s10] sm:$0x1]
        %v1832 = vlaneseq
        %v1833 = vshrl.u32 %v1832, 7
        %v1834 = vsub.s32 0, %v1833
        %v1835 = vrot.slane %v1830, %v1834
        %v1837 = vadd.f32 %v1829, %v1835
        %1838 = vst.msk [vmem:[%s462] sm:$0xff] %vm489, %v1837
        %s1839 = sand.u32 %s290, 1
        %s1840 = scalar_lea.sflag [#allocation4], %s1839
        %s1841 = sand.u32 %s290, 1
        %s1842 = smul.addr %s1841, 8
        %s1843 = scalar_lea.vmem [#allocation10], %s1842
        // Predicated region
        $region81: #{tpu_custom_call.1} parent=63 // pred_check
          %p1844 = pneg %p300
        $region82: #{tpu_custom_call.1} parent=63 // pred_check_branch
          %1846 = sbr.rel (%p1844) target = $region84
        $region83: #{tpu_custom_call.1} parent=63 // pred_region
          %s1848 = ssub.s32 128, 128
          %1849 = vsyncadd %s1840, %s1848
          %s1850 = sadd.s32 %s35, %s34
          %s1851 = smul.addr %s1850, 128
          %s1852 = scalar_lea.hbm %s11, %s1851
          %s1854 = sshll.u32 %s1843, 4
          %s1855 = int_to_ptr.vmem [resolvable:$true] %s1854
          %1857 = dma.vmem_to_hbm [thread:$0]  %s1855, 128, %s1852, %s1840
        $region84: #{tpu_custom_call.1} parent=63 // pred_fallthru
          _
      $region64: #{tpu_custom_call.1} parent=5 // pred_fallthru
        _
      %p1858 = scmp.le.s32.totalorder 2, %s25
      // Predicated region
      $region85: #{tpu_custom_call.1} parent=5 // pred_check
        %p1859 = pneg %p1858
      $region86: #{tpu_custom_call.1} parent=5 // pred_check_branch
        %1861 = sbr.rel (%p1859) target = $region88
      $region87: #{tpu_custom_call.1} parent=5 // pred_region
        %s1862 = ssub.s32 %s25, 2
        // Predicated region
        $region89: #{tpu_custom_call.1} parent=87 // pred_check
          %p1863 = pneg %p306
        $region90: #{tpu_custom_call.1} parent=87 // pred_check_branch
          %1865 = sbr.rel (%p1863) target = $region92
        $region91: #{tpu_custom_call.1} parent=87 // pred_region
          %s1866 = sand.u32 %s291, 1
          %s1867 = scalar_lea.sflag [#allocation4], %s1866
          %s1868 = sand.u32 %s291, 1
          %s1869 = smul.addr %s1868, 8
          %s1870 = scalar_lea.vmem [#allocation10], %s1869
          %1871 = dma.done %s1867, 128
        $region92: #{tpu_custom_call.1} parent=87 // pred_fallthru
          _
      $region88: #{tpu_custom_call.1} parent=5 // pred_fallthru
        _
    $region6: #{tpu_custom_call.1} parent=1 // loop_footer
      %s29 = sadd.s32 1, %s25
    $region7: #{tpu_custom_call.1} parent=1 // loop_footer_branch
      %24 = sbr.rel target = $region3
    $region8: #{tpu_custom_call.1} parent=1 // loop_exit
      _
    %1872 = vsyncpa [#allocation3], 1
    %s1873 = scalar_lea.sflag [#allocation3], 1
    %1874 = vsyncpa %s1873, 1
    %1875 = vsyncpa [#allocation6], 1
    %1876 = vsyncpa [#allocation9], 1
    %1877 = vsyncpa [#allocation4], 1
    %s1878 = scalar_lea.sflag [#allocation4], 1
    %1879 = vsyncpa %s1878, 1

</llo_original>
